<compile_context>
chip_gen: v6e
topology: v6e:2x2x1
jax: 0.10.0
libtpu: 0.0.40
codegen_flags: <defaults>
</compile_context>

<pallas_src>
import math

import numpy as np

import jax
import jax.numpy as jnp
from jax.experimental import pallas as pl
from jax.experimental.pallas import tpu as pltpu


# ---------------------------------------------------------------------------
# shared in-kernel helpers
# ---------------------------------------------------------------------------

def _vspec():
    return pl.BlockSpec(memory_space=pltpu.MemorySpace.VMEM)


def _lstm_update(x, h, c, wih_t, whh_t, b, h_out, c_out):
    # PyTorch nn.LSTMCell, gate order i, f, g, o.  Weights pre-transposed: (E,4H)/(H,4H).
    gates = (jnp.dot(x, wih_t, preferred_element_type=jnp.float32)
             + jnp.dot(h, whh_t, preferred_element_type=jnp.float32)
             + b)
    H = h.shape[1]
    i = jax.nn.sigmoid(gates[:, 0 * H:1 * H])
    f = jax.nn.sigmoid(gates[:, 1 * H:2 * H])
    g = jnp.tanh(gates[:, 2 * H:3 * H])
    o = jax.nn.sigmoid(gates[:, 3 * H:4 * H])
    c_new = f * c + i * g
    h_new = o * jnp.tanh(c_new)
    h_out[...] = h_new
    c_out[...] = c_new
    return h_new, c_new


def _log_softmax_row(logits):
    m = jnp.max(logits, axis=-1, keepdims=True)
    s = logits - m
    return s - jnp.log(jnp.sum(jnp.exp(s), axis=-1, keepdims=True))


# ---------------------------------------------------------------------------
# Pallas kernels
# ---------------------------------------------------------------------------

def image_step_kernel(p1_ref, w1t_ref, b1_ref, s2_ref, w2k_ref, b2_ref, pmat_ref,
                      wc1r_ref, bc1_ref, wc2t_ref, bc2_ref,
                      wih_ref, whh_ref, b_ref, h_ref, c_ref,
                      h_out, c_out):
    f32 = jnp.float32
    # conv1: im2col patches (P1, Cin*9) @ (Cin*9, C1) + bias, ReLU
    a1 = jnp.maximum(
        jnp.dot(p1_ref[...], w1t_ref[...], preferred_element_type=f32) + b1_ref[...], 0.0)
    # conv2: im2col via 9 static selection matmuls (zero rows model the padding),
    # then per-offset weight matmuls -- no in-kernel reshape/transpose needed.
    n_k = s2_ref.shape[0]
    acc = jnp.zeros((s2_ref.shape[1], w2k_ref.shape[2]), f32)
    for k in range(n_k):                                    # static unroll (9)
        p2k = jnp.dot(s2_ref[k], a1, preferred_element_type=f32)      # (P2, C1)
        acc = acc + jnp.dot(p2k, w2k_ref[k], preferred_element_type=f32)
    a2 = jnp.maximum(acc + b2_ref[...], 0.0)                # (P2, C2)
    # adaptive avg-pool as a pooling-matrix matmul
    pooled = jnp.dot(pmat_ref[...], a2, preferred_element_type=f32)   # (4, C2)
    # classifier[0]: Linear(flat -> cls_hidden), weight pre-reordered to (4, C2, CH)
    h1 = bc1_ref[...]
    for p in range(pmat_ref.shape[0]):                      # static unroll (4)
        h1 = h1 + jnp.dot(pooled[p:p + 1, :], wc1r_ref[p], preferred_element_type=f32)
    # classifier[3]: Linear(cls_hidden -> embedding_dim); NO activation in between
    # (the module only keeps classifier[0] and classifier[3]).
    feat = jnp.dot(h1, wc2t_ref[...], preferred_element_type=f32) + bc2_ref[...]
    # LSTMCell on the feature vector (fused into the same kernel)
    _lstm_update(feat, h_ref[...], c_ref[...],
                 wih_ref[...], whh_ref[...], b_ref[...], h_out, c_out)


def token_step_kernel(x_ref, h_ref, c_ref, wih_ref, whh_ref, b_ref, ow_ref, ob_ref,
                      logp_ref, h_out, c_out):
    # Fused LSTMCell + Linear + log_softmax (single launch per decoded token).
    h_new, _ = _lstm_update(x_ref[...], h_ref[...], c_ref[...],
                            wih_ref[...], whh_ref[...], b_ref[...], h_out, c_out)
    logits = jnp.dot(h_new, ow_ref[...], preferred_element_type=jnp.float32) + ob_ref[...]
    logp_ref[...] = _log_softmax_row(logits)   # padded lanes carry bias -1e30 -> exp()=0


def decode_seq_kernel(tok_ref, emb_ref, h0_ref, c0_ref, wih_ref, whh_ref, b_ref,
                      ow_ref, ob_ref, logp_ref, h_out, c_out):
    # grid=(T,): weights stay VMEM-resident (constant index maps), h/c are carried
    # in the constant-index output blocks, embedding row DMA'd per step via tok_ref.
    del tok_ref  # only consumed by the index_maps
    t = pl.program_id(0)

    @pl.when(t == 0)
    def _():
        h_out[...] = h0_ref[...]
        c_out[...] = c0_ref[...]

    x = emb_ref[0]                                          # (1, E)
    h_new, _ = _lstm_update(x, h_out[...], c_out[...],
                            wih_ref[...], whh_ref[...], b_ref[...], h_out, c_out)
    logits = jnp.dot(h_new, ow_ref[...], preferred_element_type=jnp.float32) + ob_ref[...]
    logp_ref[0] = _log_softmax_row(logits)


# ---------------------------------------------------------------------------
# wrappers
# ---------------------------------------------------------------------------

def im2col_conv1(x, k=3, stride=2, pad=1):
    """Wrapper-side glue on the raw image only. x: (C, H, W) -> (Ho*Wo, C*k*k)."""
    C, H, W = x.shape
    xp = jnp.pad(x, ((0, 0), (pad, pad), (pad, pad)))
    Ho = (H + 2 * pad - k) // stride + 1
    Wo = (W + 2 * pad - k) // stride + 1
    cols = [xp[:, ki:ki + stride * Ho:stride, kj:kj + stride * Wo:stride]
            for ki in range(k) for kj in range(k)]
    patches = jnp.stack(cols, axis=0)            # (k*k, C, Ho, Wo)
    patches = patches.transpose(1, 0, 2, 3)      # (C, k*k, Ho, Wo)  -> col order (c, ki, kj)
    return patches.reshape(C * k * k, Ho * Wo).T  # (Ho*Wo, C*k*k)


def run_image_step(params, image_nchw, h, c):
    assert image_nchw.shape[0] == 1, "Flatten(start_dim=0) implies batch == 1"
    patches1 = im2col_conv1(image_nchw[0])
    H = h.shape[1]
    h_new, c_new = pl.pallas_call(
        image_step_kernel,
        out_shape=(jax.ShapeDtypeStruct((1, H), jnp.float32),
                   jax.ShapeDtypeStruct((1, H), jnp.float32)),
        in_specs=[_vspec()] * 16,
        out_specs=(_vspec(), _vspec()),
    )(patches1, params["w1t"], params["b1"], params["s2"], params["w2k"], params["b2"],
      params["pmat"], params["wc1r"], params["bc1"], params["wc2t"], params["bc2"],
      params["w_ih_t"], params["w_hh_t"], params["b_lstm"], h, c)
    return h_new, c_new


def run_token_step(params, token_ids, h, c):
    x = params["emb"][token_ids]                 # (1, E) tiny glue gather
    H = h.shape[1]
    Vp = params["out_b_p"].shape[1]
    logp_pad, h_new, c_new = pl.pallas_call(
        token_step_kernel,
        out_shape=(jax.ShapeDtypeStruct((1, Vp), jnp.float32),
                   jax.ShapeDtypeStruct((1, H), jnp.float32),
                   jax.ShapeDtypeStruct((1, H), jnp.float32)),
        in_specs=[_vspec()] * 8,
        out_specs=(_vspec(), _vspec(), _vspec()),
    )(x, h, c, params["w_ih_t"], params["w_hh_t"], params["b_lstm"],
      params["out_w_t"], params["out_b_p"])
    return logp_pad[:, :params["V"]], h_new, c_new


def decode_tokens(params, token_ids, h, c):
    """Greedy-feed decode of a whole token sequence in ONE pallas_call (grid over time)."""
    T = int(token_ids.shape[0])
    E = params["emb"].shape[1]
    H = h.shape[1]
    Vp = params["out_b_p"].shape[1]
    grid_spec = pltpu.PrefetchScalarGridSpec(
        num_scalar_prefetch=1,
        grid=(T,),
        in_specs=[
            pl.BlockSpec((1, 1, E), lambda t, tok: (tok[t], 0, 0)),   # emb row gather
            pl.BlockSpec((1, H), lambda t, tok: (0, 0)),              # h0
            pl.BlockSpec((1, H), lambda t, tok: (0, 0)),              # c0
            pl.BlockSpec((E, 4 * H), lambda t, tok: (0, 0)),          # w_ih_t (resident)
            pl.BlockSpec((H, 4 * H), lambda t, tok: (0, 0)),          # w_hh_t (resident)
            pl.BlockSpec((1, 4 * H), lambda t, tok: (0, 0)),          # b_lstm
            pl.BlockSpec((H, Vp), lambda t, tok: (0, 0)),             # out_w_t (resident)
            pl.BlockSpec((1, Vp), lambda t, tok: (0, 0)),             # out_b_p
        ],
        out_specs=(
            pl.BlockSpec((1, 1, Vp), lambda t, tok: (t, 0, 0)),       # per-step log-probs
            pl.BlockSpec((1, H), lambda t, tok: (0, 0)),              # h carry / final
            pl.BlockSpec((1, H), lambda t, tok: (0, 0)),              # c carry / final
        ),
    )
    logp_pad, h_new, c_new = pl.pallas_call(
        decode_seq_kernel,
        out_shape=(jax.ShapeDtypeStruct((T, 1, Vp), jnp.float32),
                   jax.ShapeDtypeStruct((1, H), jnp.float32),
                   jax.ShapeDtypeStruct((1, H), jnp.float32)),
        grid_spec=grid_spec,
        compiler_params=pltpu.CompilerParams(dimension_semantics=("arbitrary",)),
    )(token_ids, params["emb3"], h, c, params["w_ih_t"], params["w_hh_t"],
      params["b_lstm"], params["out_w_t"], params["out_b_p"])
    return logp_pad[:, 0, :params["V"]], h_new, c_new


def show_and_tell_forward(params, input_tensor, hidden_state, cell_state, is_image=False):
    if is_image:
        return run_image_step(params, input_tensor, hidden_state, cell_state)
    else:
        return run_token_step(params, input_tensor, hidden_state, cell_state)


# ---------------------------------------------------------------------------
# parameter init (PyTorch layout) + one-time kernel-layout preparation
# ---------------------------------------------------------------------------

def _uniform(key, shape, fan_in):
    bound = 1.0 / math.sqrt(fan_in)
    return jax.random.uniform(key, shape, jnp.float32, -bound, bound)


def init_params(key, *, c_in, c1, c2, cls_hidden, embedding_dim, vocab_size, hidden_size):
    ks = jax.random.split(key, 16)
    flat_dim = c2 * 2 * 2
    return {
        "conv1_w": _uniform(ks[0], (c1, c_in, 3, 3), c_in * 9),
        "conv1_b": _uniform(ks[1], (c1,), c_in * 9),
        "conv2_w": _uniform(ks[2], (c2, c1, 3, 3), c1 * 9),
        "conv2_b": _uniform(ks[3], (c2,), c1 * 9),
        "cls1_w": _uniform(ks[4], (cls_hidden, flat_dim), flat_dim),
        "cls1_b": _uniform(ks[5], (cls_hidden,), flat_dim),
        "cls2_w": _uniform(ks[6], (embedding_dim, cls_hidden), cls_hidden),
        "cls2_b": _uniform(ks[7], (embedding_dim,), cls_hidden),
        "emb": jax.random.normal(ks[8], (vocab_size, embedding_dim), jnp.float32),
        "w_ih": _uniform(ks[9], (4 * hidden_size, embedding_dim), hidden_size),
        "w_hh": _uniform(ks[10], (4 * hidden_size, hidden_size), hidden_size),
        "b_ih": _uniform(ks[11], (4 * hidden_size,), hidden_size),
        "b_hh": _uniform(ks[12], (4 * hidden_size,), hidden_size),
        "out_w": _uniform(ks[13], (vocab_size, hidden_size), hidden_size),
        "out_b": _uniform(ks[14], (vocab_size,), hidden_size),
    }


def _build_conv_selectors(hin, win, k, stride, pad):
    hout = (hin + 2 * pad - k) // stride + 1
    wout = (win + 2 * pad - k) // stride + 1
    S = np.zeros((k * k, hout * wout, hin * win), np.float32)
    for ki in range(k):
        for kj in range(k):
            for ro in range(hout):
                for co in range(wout):
                    ri = ro * stride + ki - pad
                    ci = co * stride + kj - pad
                    if 0 <= ri < hin and 0 <= ci < win:
                        S[ki * k + kj, ro * wout + co, ri * win + ci] = 1.0
    return jnp.asarray(S), hout, wout


def _build_pool_matrix(hin, win, oh, ow):
    # TODO(synk): only handles output sizes that evenly divide the input (the 4x4 -> 2x2 case).
    P = np.zeros((oh * ow, hin * win), np.float32)
    sh, sw = hin // oh, win // ow
    for pr in range(oh):
        for pc in range(ow):
            for r in range(pr * sh, (pr + 1) * sh):
                for c in range(pc * sw, (pc + 1) * sw):
                    P[pr * ow + pc, r * win + c] = 1.0 / (sh * sw)
    return jnp.asarray(P)


def prepare_params(raw, *, img, c_in, lane_pad=128):
    """Derive kernel-layout params (pre-transposed, lane-padded) from PyTorch-layout params."""
    c1 = raw["conv1_w"].shape[0]
    c2 = raw["conv2_w"].shape[0]
    cls_hidden, flat_dim = raw["cls1_w"].shape
    emb_dim = raw["cls2_w"].shape[0]
    hidden = raw["w_hh"].shape[1]
    vocab = raw["out_w"].shape[0]

    h1 = (img + 2 - 3) // 2 + 1          # conv1 output spatial
    h2 = (h1 + 2 - 3) // 2 + 1           # conv2 output spatial
    assert h2 % 2 == 0 and flat_dim == c2 * 4, "geometry mismatch with synthetic image model"

    s2, _, _ = _build_conv_selectors(h1, h1, 3, 2, 1)     # (9, h2*h2, h1*h1)
    pmat = _build_pool_matrix(h2, h2, 2, 2)               # (4, h2*h2)

    vp = ((vocab + lane_pad - 1) // lane_pad) * lane_pad
    out_w_t = jnp.zeros((hidden, vp), jnp.float32).at[:, :vocab].set(raw["out_w"].T)
    out_b_p = jnp.full((1, vp), -1e30, jnp.float32).at[0, :vocab].set(raw["out_b"])

    return {
        # image path
        "w1t": raw["conv1_w"].reshape(c1, c_in * 9).T,                    # (cin*9, c1)
        "b1": raw["conv1_b"].reshape(1, c1),
        "s2": s2,                                                         # (9, P2, P1)
        "w2k": raw["conv2_w"].transpose(2, 3, 1, 0).reshape(9, c1, c2),   # (9, c1, c2)
        "b2": raw["conv2_b"].reshape(1, c2),
        "pmat": pmat,                                                     # (4, P2)
        "wc1r": raw["cls1_w"].reshape(cls_hidden, c2, 4).transpose(2, 1, 0),  # (4, c2, CH)
        "bc1": raw["cls1_b"].reshape(1, cls_hidden),
        "wc2t": raw["cls2_w"].T,                                          # (CH, E)
        "bc2": raw["cls2_b"].reshape(1, emb_dim),
        # decoder
        "emb": raw["emb"],                                                # (V, E)
        "emb3": raw["emb"].reshape(vocab, 1, emb_dim),                    # (V, 1, E)
        "w_ih_t": raw["w_ih"].T,                                          # (E, 4H)
        "w_hh_t": raw["w_hh"].T,                                          # (H, 4H)
        "b_lstm": (raw["b_ih"] + raw["b_hh"]).reshape(1, 4 * hidden),
        "out_w_t": out_w_t,                                               # (H, Vp)
        "out_b_p": out_b_p,                                               # (1, Vp), pad=-1e30
        "V": vocab,
    }


# ---------------------------------------------------------------------------
# pure-JAX references (for self-check only)
# ---------------------------------------------------------------------------

def _ref_lstm(raw, x, h, c):
    gates = x @ raw["w_ih"].T + h @ raw["w_hh"].T + raw["b_ih"] + raw["b_hh"]
    H = h.shape[1]
    i = jax.nn.sigmoid(gates[:, :H])
    f = jax.nn.sigmoid(gates[:, H:2 * H])
    g = jnp.tanh(gates[:, 2 * H:3 * H])
    o = jax.nn.sigmoid(gates[:, 3 * H:])
    c_new = f * c + i * g
    return o * jnp.tanh(c_new), c_new


def ref_image_step(raw, image, h, c):
    x = jax.lax.conv_general_dilated(image, raw["conv1_w"], (2, 2), [(1, 1), (1, 1)],
                                     dimension_numbers=("NCHW", "OIHW", "NCHW"))
    x = jnp.maximum(x + raw["conv1_b"][None, :, None, None], 0.0)
    x = jax.lax.conv_general_dilated(x, raw["conv2_w"], (2, 2), [(1, 1), (1, 1)],
                                     dimension_numbers=("NCHW", "OIHW", "NCHW"))
    x = jnp.maximum(x + raw["conv2_b"][None, :, None, None], 0.0)
    n, ch, hh, ww = x.shape
    x = x.reshape(n, ch, 2, hh // 2, 2, ww // 2).mean(axis=(3, 5))
    flat = x[0].reshape(-1)
    h1 = flat @ raw["cls1_w"].T + raw["cls1_b"]
    feat = h1 @ raw["cls2_w"].T + raw["cls2_b"]
    return _ref_lstm(raw, feat[None, :], h, c)


def ref_token_step(raw, token, h, c):
    x = raw["emb"][token]
    h_new, c_new = _ref_lstm(raw, x, h, c)
    logits = h_new @ raw["out_w"].T + raw["out_b"]
    return jax.nn.log_softmax(logits, axis=1), h_new, c_new


# ---------------------------------------------------------------------------

if __name__ == "__main__":
    EMBEDDING_DIM = 32
    HIDDEN_SIZE = 32
    VOCAB_SIZE = 40
    C_IN, IMG = 3, 16

    key = jax.random.PRNGKey(0)
    k_param, k_img = jax.random.split(key)
    raw = init_params(k_param, c_in=C_IN, c1=8, c2=8, cls_hidden=64,
                      embedding_dim=EMBEDDING_DIM, vocab_size=VOCAB_SIZE,
                      hidden_size=HIDDEN_SIZE)
    params = prepare_params(raw, img=IMG, c_in=C_IN)

    image = jax.random.normal(k_img, (1, C_IN, IMG, IMG), jnp.float32)
    h0 = jnp.zeros((1, HIDDEN_SIZE), jnp.float32)   # LSTMDecoder.init_hidden()
    c0 = jnp.zeros((1, HIDDEN_SIZE), jnp.float32)

    # Step 1: feed the image (is_image=True) -- one fused kernel
    h1, c1 = show_and_tell_forward(params, image, h0, c0, is_image=True)

    # Step 2: feed a token (is_image=False) -- one fused kernel
    token = jnp.array([3], dtype=jnp.int32)
    log_probs, h2, c2 = show_and_tell_forward(params, token, h1, c1, is_image=False)

    # Step 3: fused multi-token decode (single pallas_call, grid over timesteps)
    tokens = jnp.array([3, 5, 1, 7, 2, 0], dtype=jnp.int32)
    seq_logp, h_seq, c_seq = decode_tokens(params, tokens, h1, c1)

    jax.block_until_ready((h1, c1, log_probs, h2, c2, seq_logp, h_seq, c_seq))

    # ---- self checks against pure-JAX references ----
    with jax.default_matmul_precision("float32"):
        h1_ref, c1_ref = ref_image_step(raw, image, h0, c0)
        lp_ref, h2_ref, c2_ref = ref_token_step(raw, token, h1_ref, c1_ref)

    assert jnp.allclose(h1, h1_ref, atol=1e-3, rtol=1e-3)
    assert jnp.allclose(c1, c1_ref, atol=1e-3, rtol=1e-3)

    assert log_probs.shape == (1, VOCAB_SIZE)
    assert abs(float(jnp.exp(log_probs).sum()) - 1.0) < 1e-4
    assert jnp.allclose(log_probs, lp_ref, atol=1e-3, rtol=1e-3)
    assert jnp.allclose(h2, h2_ref, atol=1e-3, rtol=1e-3)
    assert jnp.allclose(c2, c2_ref, atol=1e-3, rtol=1e-3)

    # fused sequence decode must match running the single-step kernel step by step
    h_r, c_r = h1, c1
    step_logps = []
    for t in range(int(tokens.shape[0])):
        lp_t, h_r, c_r = run_token_step(params, tokens[t:t + 1], h_r, c_r)
        step_logps.append(lp_t)
    step_logps = jnp.concatenate(step_logps, axis=0)
    assert seq_logp.shape == (int(tokens.shape[0]), VOCAB_SIZE)
    assert jnp.allclose(seq_logp, step_logps, atol=1e-5)
    assert jnp.allclose(h_seq, h_r, atol=1e-5)
    assert jnp.allclose(c_seq, c_r, atol=1e-5)

    print("KERNEL_OK")
</pallas_src>

<mosaic_0001>
module attributes {stable_mosaic.version = 11 : i64} {
  func.func @image_step_kernel(%arg0: memref<64x27xf32, #tpu.memory_space<vmem>>, %arg1: memref<27x8xf32, #tpu.memory_space<vmem>>, %arg2: memref<1x8xf32, #tpu.memory_space<vmem>>, %arg3: memref<9x16x64xf32, #tpu.memory_space<vmem>>, %arg4: memref<9x8x8xf32, #tpu.memory_space<vmem>>, %arg5: memref<1x8xf32, #tpu.memory_space<vmem>>, %arg6: memref<4x16xf32, #tpu.memory_space<vmem>>, %arg7: memref<4x8x64xf32, #tpu.memory_space<vmem>>, %arg8: memref<1x64xf32, #tpu.memory_space<vmem>>, %arg9: memref<64x32xf32, #tpu.memory_space<vmem>>, %arg10: memref<1x32xf32, #tpu.memory_space<vmem>>, %arg11: memref<32x128xf32, #tpu.memory_space<vmem>>, %arg12: memref<32x128xf32, #tpu.memory_space<vmem>>, %arg13: memref<1x128xf32, #tpu.memory_space<vmem>>, %arg14: memref<1x32xf32, #tpu.memory_space<vmem>>, %arg15: memref<1x32xf32, #tpu.memory_space<vmem>>, %arg16: memref<1x32xf32, #tpu.memory_space<vmem>>, %arg17: memref<1x32xf32, #tpu.memory_space<vmem>>) attributes {dimension_semantics = [], scalar_prefetch = 0 : i64, scratch_operands = 0 : i64, tpu.core_type = #tpu.core_type<tc>} {
    %c0 = arith.constant 0 : index
    %c0_0 = arith.constant 0 : index
    %0 = vector.load %arg0[%c0, %c0_0] : memref<64x27xf32, #tpu.memory_space<vmem>>, vector<64x27xf32>
    %c0_1 = arith.constant 0 : index
    %c0_2 = arith.constant 0 : index
    %1 = vector.load %arg1[%c0_1, %c0_2] : memref<27x8xf32, #tpu.memory_space<vmem>>, vector<27x8xf32>
    %cst = arith.constant dense<0.000000e+00> : vector<64x8xf32>
    %2 = tpu.matmul %0, %1, %cst {dimension_numbers = #tpu.dot_dimension_numbers<[1], [0], [0], [1], [0, 0, 1, 1], [], []>} : vector<64x27xf32>, vector<27x8xf32>, vector<64x8xf32> -> vector<64x8xf32>
    %c0_3 = arith.constant 0 : index
    %c0_4 = arith.constant 0 : index
    %3 = vector.load %arg2[%c0_3, %c0_4] : memref<1x8xf32, #tpu.memory_space<vmem>>, vector<1x8xf32>
    %4 = vector.broadcast %3 : vector<1x8xf32> to vector<64x8xf32>
    %5 = arith.addf %2, %4 : vector<64x8xf32>
    %cst_5 = arith.constant 0.000000e+00 : f32
    %6 = vector.broadcast %cst_5 : f32 to vector<64x8xf32>
    %7 = arith.maximumf %5, %6 : vector<64x8xf32>
    %cst_6 = arith.constant 0.000000e+00 : f32
    %8 = vector.broadcast %cst_6 : f32 to vector<16x8xf32>
    %c0_7 = arith.constant 0 : index
    %c0_8 = arith.constant 0 : index
    %c0_9 = arith.constant 0 : index
    %9 = vector.load %arg3[%c0_7, %c0_8, %c0_9] : memref<9x16x64xf32, #tpu.memory_space<vmem>>, vector<1x16x64xf32>
    %10 = vector.shape_cast %9 : vector<1x16x64xf32> to vector<16x64xf32>
    %cst_10 = arith.constant dense<0.000000e+00> : vector<16x8xf32>
    %11 = tpu.matmul %10, %7, %cst_10 {dimension_numbers = #tpu.dot_dimension_numbers<[1], [0], [0], [1], [0, 0, 1, 1], [], []>} : vector<16x64xf32>, vector<64x8xf32>, vector<16x8xf32> -> vector<16x8xf32>
    %c0_11 = arith.constant 0 : index
    %c0_12 = arith.constant 0 : index
    %c0_13 = arith.constant 0 : index
    %12 = vector.load %arg4[%c0_11, %c0_12, %c0_13] : memref<9x8x8xf32, #tpu.memory_space<vmem>>, vector<1x8x8xf32>
    %13 = vector.shape_cast %12 : vector<1x8x8xf32> to vector<8x8xf32>
    %cst_14 = arith.constant dense<0.000000e+00> : vector<16x8xf32>
    %14 = tpu.matmul %11, %13, %cst_14 {dimension_numbers = #tpu.dot_dimension_numbers<[1], [0], [0], [1], [0, 0, 1, 1], [], []>} : vector<16x8xf32>, vector<8x8xf32>, vector<16x8xf32> -> vector<16x8xf32>
    %15 = arith.addf %8, %14 : vector<16x8xf32>
    %c1 = arith.constant 1 : index
    %c0_15 = arith.constant 0 : index
    %c0_16 = arith.constant 0 : index
    %16 = vector.load %arg3[%c1, %c0_15, %c0_16] : memref<9x16x64xf32, #tpu.memory_space<vmem>>, vector<1x16x64xf32>
    %17 = vector.shape_cast %16 : vector<1x16x64xf32> to vector<16x64xf32>
    %cst_17 = arith.constant dense<0.000000e+00> : vector<16x8xf32>
    %18 = tpu.matmul %17, %7, %cst_17 {dimension_numbers = #tpu.dot_dimension_numbers<[1], [0], [0], [1], [0, 0, 1, 1], [], []>} : vector<16x64xf32>, vector<64x8xf32>, vector<16x8xf32> -> vector<16x8xf32>
    %c1_18 = arith.constant 1 : index
    %c0_19 = arith.constant 0 : index
    %c0_20 = arith.constant 0 : index
    %19 = vector.load %arg4[%c1_18, %c0_19, %c0_20] : memref<9x8x8xf32, #tpu.memory_space<vmem>>, vector<1x8x8xf32>
    %20 = vector.shape_cast %19 : vector<1x8x8xf32> to vector<8x8xf32>
    %cst_21 = arith.constant dense<0.000000e+00> : vector<16x8xf32>
    %21 = tpu.matmul %18, %20, %cst_21 {dimension_numbers = #tpu.dot_dimension_numbers<[1], [0], [0], [1], [0, 0, 1, 1], [], []>} : vector<16x8xf32>, vector<8x8xf32>, vector<16x8xf32> -> vector<16x8xf32>
    %22 = arith.addf %15, %21 : vector<16x8xf32>
    %c2 = arith.constant 2 : index
    %c0_22 = arith.constant 0 : index
    %c0_23 = arith.constant 0 : index
    %23 = vector.load %arg3[%c2, %c0_22, %c0_23] : memref<9x16x64xf32, #tpu.memory_space<vmem>>, vector<1x16x64xf32>
    %24 = vector.shape_cast %23 : vector<1x16x64xf32> to vector<16x64xf32>
    %cst_24 = arith.constant dense<0.000000e+00> : vector<16x8xf32>
    %25 = tpu.matmul %24, %7, %cst_24 {dimension_numbers = #tpu.dot_dimension_numbers<[1], [0], [0], [1], [0, 0, 1, 1], [], []>} : vector<16x64xf32>, vector<64x8xf32>, vector<16x8xf32> -> vector<16x8xf32>
    %c2_25 = arith.constant 2 : index
    %c0_26 = arith.constant 0 : index
    %c0_27 = arith.constant 0 : index
    %26 = vector.load %arg4[%c2_25, %c0_26, %c0_27] : memref<9x8x8xf32, #tpu.memory_space<vmem>>, vector<1x8x8xf32>
    %27 = vector.shape_cast %26 : vector<1x8x8xf32> to vector<8x8xf32>
    %cst_28 = arith.constant dense<0.000000e+00> : vector<16x8xf32>
    %28 = tpu.matmul %25, %27, %cst_28 {dimension_numbers = #tpu.dot_dimension_numbers<[1], [0], [0], [1], [0, 0, 1, 1], [], []>} : vector<16x8xf32>, vector<8x8xf32>, vector<16x8xf32> -> vector<16x8xf32>
    %29 = arith.addf %22, %28 : vector<16x8xf32>
    %c3 = arith.constant 3 : index
    %c0_29 = arith.constant 0 : index
    %c0_30 = arith.constant 0 : index
    %30 = vector.load %arg3[%c3, %c0_29, %c0_30] : memref<9x16x64xf32, #tpu.memory_space<vmem>>, vector<1x16x64xf32>
    %31 = vector.shape_cast %30 : vector<1x16x64xf32> to vector<16x64xf32>
    %cst_31 = arith.constant dense<0.000000e+00> : vector<16x8xf32>
    %32 = tpu.matmul %31, %7, %cst_31 {dimension_numbers = #tpu.dot_dimension_numbers<[1], [0], [0], [1], [0, 0, 1, 1], [], []>} : vector<16x64xf32>, vector<64x8xf32>, vector<16x8xf32> -> vector<16x8xf32>
    %c3_32 = arith.constant 3 : index
    %c0_33 = arith.constant 0 : index
    %c0_34 = arith.constant 0 : index
    %33 = vector.load %arg4[%c3_32, %c0_33, %c0_34] : memref<9x8x8xf32, #tpu.memory_space<vmem>>, vector<1x8x8xf32>
    %34 = vector.shape_cast %33 : vector<1x8x8xf32> to vector<8x8xf32>
    %cst_35 = arith.constant dense<0.000000e+00> : vector<16x8xf32>
    %35 = tpu.matmul %32, %34, %cst_35 {dimension_numbers = #tpu.dot_dimension_numbers<[1], [0], [0], [1], [0, 0, 1, 1], [], []>} : vector<16x8xf32>, vector<8x8xf32>, vector<16x8xf32> -> vector<16x8xf32>
    %36 = arith.addf %29, %35 : vector<16x8xf32>
    %c4 = arith.constant 4 : index
    %c0_36 = arith.constant 0 : index
    %c0_37 = arith.constant 0 : index
    %37 = vector.load %arg3[%c4, %c0_36, %c0_37] : memref<9x16x64xf32, #tpu.memory_space<vmem>>, vector<1x16x64xf32>
    %38 = vector.shape_cast %37 : vector<1x16x64xf32> to vector<16x64xf32>
    %cst_38 = arith.constant dense<0.000000e+00> : vector<16x8xf32>
    %39 = tpu.matmul %38, %7, %cst_38 {dimension_numbers = #tpu.dot_dimension_numbers<[1], [0], [0], [1], [0, 0, 1, 1], [], []>} : vector<16x64xf32>, vector<64x8xf32>, vector<16x8xf32> -> vector<16x8xf32>
    %c4_39 = arith.constant 4 : index
    %c0_40 = arith.constant 0 : index
    %c0_41 = arith.constant 0 : index
    %40 = vector.load %arg4[%c4_39, %c0_40, %c0_41] : memref<9x8x8xf32, #tpu.memory_space<vmem>>, vector<1x8x8xf32>
    %41 = vector.shape_cast %40 : vector<1x8x8xf32> to vector<8x8xf32>
    %cst_42 = arith.constant dense<0.000000e+00> : vector<16x8xf32>
    %42 = tpu.matmul %39, %41, %cst_42 {dimension_numbers = #tpu.dot_dimension_numbers<[1], [0], [0], [1], [0, 0, 1, 1], [], []>} : vector<16x8xf32>, vector<8x8xf32>, vector<16x8xf32> -> vector<16x8xf32>
    %43 = arith.addf %36, %42 : vector<16x8xf32>
    %c5 = arith.constant 5 : index
    %c0_43 = arith.constant 0 : index
    %c0_44 = arith.constant 0 : index
    %44 = vector.load %arg3[%c5, %c0_43, %c0_44] : memref<9x16x64xf32, #tpu.memory_space<vmem>>, vector<1x16x64xf32>
    %45 = vector.shape_cast %44 : vector<1x16x64xf32> to vector<16x64xf32>
    %cst_45 = arith.constant dense<0.000000e+00> : vector<16x8xf32>
    %46 = tpu.matmul %45, %7, %cst_45 {dimension_numbers = #tpu.dot_dimension_numbers<[1], [0], [0], [1], [0, 0, 1, 1], [], []>} : vector<16x64xf32>, vector<64x8xf32>, vector<16x8xf32> -> vector<16x8xf32>
    %c5_46 = arith.constant 5 : index
    %c0_47 = arith.constant 0 : index
    %c0_48 = arith.constant 0 : index
    %47 = vector.load %arg4[%c5_46, %c0_47, %c0_48] : memref<9x8x8xf32, #tpu.memory_space<vmem>>, vector<1x8x8xf32>
    %48 = vector.shape_cast %47 : vector<1x8x8xf32> to vector<8x8xf32>
    %cst_49 = arith.constant dense<0.000000e+00> : vector<16x8xf32>
    %49 = tpu.matmul %46, %48, %cst_49 {dimension_numbers = #tpu.dot_dimension_numbers<[1], [0], [0], [1], [0, 0, 1, 1], [], []>} : vector<16x8xf32>, vector<8x8xf32>, vector<16x8xf32> -> vector<16x8xf32>
    %50 = arith.addf %43, %49 : vector<16x8xf32>
    %c6 = arith.constant 6 : index
    %c0_50 = arith.constant 0 : index
    %c0_51 = arith.constant 0 : index
    %51 = vector.load %arg3[%c6, %c0_50, %c0_51] : memref<9x16x64xf32, #tpu.memory_space<vmem>>, vector<1x16x64xf32>
    %52 = vector.shape_cast %51 : vector<1x16x64xf32> to vector<16x64xf32>
    %cst_52 = arith.constant dense<0.000000e+00> : vector<16x8xf32>
    %53 = tpu.matmul %52, %7, %cst_52 {dimension_numbers = #tpu.dot_dimension_numbers<[1], [0], [0], [1], [0, 0, 1, 1], [], []>} : vector<16x64xf32>, vector<64x8xf32>, vector<16x8xf32> -> vector<16x8xf32>
    %c6_53 = arith.constant 6 : index
    %c0_54 = arith.constant 0 : index
    %c0_55 = arith.constant 0 : index
    %54 = vector.load %arg4[%c6_53, %c0_54, %c0_55] : memref<9x8x8xf32, #tpu.memory_space<vmem>>, vector<1x8x8xf32>
    %55 = vector.shape_cast %54 : vector<1x8x8xf32> to vector<8x8xf32>
    %cst_56 = arith.constant dense<0.000000e+00> : vector<16x8xf32>
    %56 = tpu.matmul %53, %55, %cst_56 {dimension_numbers = #tpu.dot_dimension_numbers<[1], [0], [0], [1], [0, 0, 1, 1], [], []>} : vector<16x8xf32>, vector<8x8xf32>, vector<16x8xf32> -> vector<16x8xf32>
    %57 = arith.addf %50, %56 : vector<16x8xf32>
    %c7 = arith.constant 7 : index
    %c0_57 = arith.constant 0 : index
    %c0_58 = arith.constant 0 : index
    %58 = vector.load %arg3[%c7, %c0_57, %c0_58] : memref<9x16x64xf32, #tpu.memory_space<vmem>>, vector<1x16x64xf32>
    %59 = vector.shape_cast %58 : vector<1x16x64xf32> to vector<16x64xf32>
    %cst_59 = arith.constant dense<0.000000e+00> : vector<16x8xf32>
    %60 = tpu.matmul %59, %7, %cst_59 {dimension_numbers = #tpu.dot_dimension_numbers<[1], [0], [0], [1], [0, 0, 1, 1], [], []>} : vector<16x64xf32>, vector<64x8xf32>, vector<16x8xf32> -> vector<16x8xf32>
    %c7_60 = arith.constant 7 : index
    %c0_61 = arith.constant 0 : index
    %c0_62 = arith.constant 0 : index
    %61 = vector.load %arg4[%c7_60, %c0_61, %c0_62] : memref<9x8x8xf32, #tpu.memory_space<vmem>>, vector<1x8x8xf32>
    %62 = vector.shape_cast %61 : vector<1x8x8xf32> to vector<8x8xf32>
    %cst_63 = arith.constant dense<0.000000e+00> : vector<16x8xf32>
    %63 = tpu.matmul %60, %62, %cst_63 {dimension_numbers = #tpu.dot_dimension_numbers<[1], [0], [0], [1], [0, 0, 1, 1], [], []>} : vector<16x8xf32>, vector<8x8xf32>, vector<16x8xf32> -> vector<16x8xf32>
    %64 = arith.addf %57, %63 : vector<16x8xf32>
    %c8 = arith.constant 8 : index
    %c0_64 = arith.constant 0 : index
    %c0_65 = arith.constant 0 : index
    %65 = vector.load %arg3[%c8, %c0_64, %c0_65] : memref<9x16x64xf32, #tpu.memory_space<vmem>>, vector<1x16x64xf32>
    %66 = vector.shape_cast %65 : vector<1x16x64xf32> to vector<16x64xf32>
    %cst_66 = arith.constant dense<0.000000e+00> : vector<16x8xf32>
    %67 = tpu.matmul %66, %7, %cst_66 {dimension_numbers = #tpu.dot_dimension_numbers<[1], [0], [0], [1], [0, 0, 1, 1], [], []>} : vector<16x64xf32>, vector<64x8xf32>, vector<16x8xf32> -> vector<16x8xf32>
    %c8_67 = arith.constant 8 : index
    %c0_68 = arith.constant 0 : index
    %c0_69 = arith.constant 0 : index
    %68 = vector.load %arg4[%c8_67, %c0_68, %c0_69] : memref<9x8x8xf32, #tpu.memory_space<vmem>>, vector<1x8x8xf32>
    %69 = vector.shape_cast %68 : vector<1x8x8xf32> to vector<8x8xf32>
    %cst_70 = arith.constant dense<0.000000e+00> : vector<16x8xf32>
    %70 = tpu.matmul %67, %69, %cst_70 {dimension_numbers = #tpu.dot_dimension_numbers<[1], [0], [0], [1], [0, 0, 1, 1], [], []>} : vector<16x8xf32>, vector<8x8xf32>, vector<16x8xf32> -> vector<16x8xf32>
    %71 = arith.addf %64, %70 : vector<16x8xf32>
    %c0_71 = arith.constant 0 : index
    %c0_72 = arith.constant 0 : index
    %72 = vector.load %arg5[%c0_71, %c0_72] : memref<1x8xf32, #tpu.memory_space<vmem>>, vector<1x8xf32>
    %73 = vector.broadcast %72 : vector<1x8xf32> to vector<16x8xf32>
    %74 = arith.addf %71, %73 : vector<16x8xf32>
    %cst_73 = arith.constant 0.000000e+00 : f32
    %75 = vector.broadcast %cst_73 : f32 to vector<16x8xf32>
    %76 = arith.maximumf %74, %75 : vector<16x8xf32>
    %c0_74 = arith.constant 0 : index
    %c0_75 = arith.constant 0 : index
    %77 = vector.load %arg6[%c0_74, %c0_75] : memref<4x16xf32, #tpu.memory_space<vmem>>, vector<4x16xf32>
    %cst_76 = arith.constant dense<0.000000e+00> : vector<4x8xf32>
    %78 = tpu.matmul %77, %76, %cst_76 {dimension_numbers = #tpu.dot_dimension_numbers<[1], [0], [0], [1], [0, 0, 1, 1], [], []>} : vector<4x16xf32>, vector<16x8xf32>, vector<4x8xf32> -> vector<4x8xf32>
    %c0_77 = arith.constant 0 : index
    %c0_78 = arith.constant 0 : index
    %79 = vector.load %arg8[%c0_77, %c0_78] : memref<1x64xf32, #tpu.memory_space<vmem>>, vector<1x64xf32>
    %80 = vector.extract_strided_slice %78 {offsets = [0, 0], sizes = [1, 8], strides = [1, 1]} : vector<4x8xf32> to vector<1x8xf32>
    %c0_79 = arith.constant 0 : index
    %c0_80 = arith.constant 0 : index
    %c0_81 = arith.constant 0 : index
    %81 = vector.load %arg7[%c0_79, %c0_80, %c0_81] : memref<4x8x64xf32, #tpu.memory_space<vmem>>, vector<1x8x64xf32>
    %82 = vector.shape_cast %81 : vector<1x8x64xf32> to vector<8x64xf32>
    %cst_82 = arith.constant dense<0.000000e+00> : vector<1x64xf32>
    %83 = tpu.matmul %80, %82, %cst_82 {dimension_numbers = #tpu.dot_dimension_numbers<[1], [0], [0], [1], [0, 0, 1, 1], [], []>} : vector<1x8xf32>, vector<8x64xf32>, vector<1x64xf32> -> vector<1x64xf32>
    %84 = arith.addf %79, %83 : vector<1x64xf32>
    %85 = vector.extract_strided_slice %78 {offsets = [1, 0], sizes = [1, 8], strides = [1, 1]} : vector<4x8xf32> to vector<1x8xf32>
    %c1_83 = arith.constant 1 : index
    %c0_84 = arith.constant 0 : index
    %c0_85 = arith.constant 0 : index
    %86 = vector.load %arg7[%c1_83, %c0_84, %c0_85] : memref<4x8x64xf32, #tpu.memory_space<vmem>>, vector<1x8x64xf32>
    %87 = vector.shape_cast %86 : vector<1x8x64xf32> to vector<8x64xf32>
    %cst_86 = arith.constant dense<0.000000e+00> : vector<1x64xf32>
    %88 = tpu.matmul %85, %87, %cst_86 {dimension_numbers = #tpu.dot_dimension_numbers<[1], [0], [0], [1], [0, 0, 1, 1], [], []>} : vector<1x8xf32>, vector<8x64xf32>, vector<1x64xf32> -> vector<1x64xf32>
    %89 = arith.addf %84, %88 : vector<1x64xf32>
    %90 = vector.extract_strided_slice %78 {offsets = [2, 0], sizes = [1, 8], strides = [1, 1]} : vector<4x8xf32> to vector<1x8xf32>
    %c2_87 = arith.constant 2 : index
    %c0_88 = arith.constant 0 : index
    %c0_89 = arith.constant 0 : index
    %91 = vector.load %arg7[%c2_87, %c0_88, %c0_89] : memref<4x8x64xf32, #tpu.memory_space<vmem>>, vector<1x8x64xf32>
    %92 = vector.shape_cast %91 : vector<1x8x64xf32> to vector<8x64xf32>
    %cst_90 = arith.constant dense<0.000000e+00> : vector<1x64xf32>
    %93 = tpu.matmul %90, %92, %cst_90 {dimension_numbers = #tpu.dot_dimension_numbers<[1], [0], [0], [1], [0, 0, 1, 1], [], []>} : vector<1x8xf32>, vector<8x64xf32>, vector<1x64xf32> -> vector<1x64xf32>
    %94 = arith.addf %89, %93 : vector<1x64xf32>
    %95 = vector.extract_strided_slice %78 {offsets = [3, 0], sizes = [1, 8], strides = [1, 1]} : vector<4x8xf32> to vector<1x8xf32>
    %c3_91 = arith.constant 3 : index
    %c0_92 = arith.constant 0 : index
    %c0_93 = arith.constant 0 : index
    %96 = vector.load %arg7[%c3_91, %c0_92, %c0_93] : memref<4x8x64xf32, #tpu.memory_space<vmem>>, vector<1x8x64xf32>
    %97 = vector.shape_cast %96 : vector<1x8x64xf32> to vector<8x64xf32>
    %cst_94 = arith.constant dense<0.000000e+00> : vector<1x64xf32>
    %98 = tpu.matmul %95, %97, %cst_94 {dimension_numbers = #tpu.dot_dimension_numbers<[1], [0], [0], [1], [0, 0, 1, 1], [], []>} : vector<1x8xf32>, vector<8x64xf32>, vector<1x64xf32> -> vector<1x64xf32>
    %99 = arith.addf %94, %98 : vector<1x64xf32>
    %c0_95 = arith.constant 0 : index
    %c0_96 = arith.constant 0 : index
    %100 = vector.load %arg9[%c0_95, %c0_96] : memref<64x32xf32, #tpu.memory_space<vmem>>, vector<64x32xf32>
    %cst_97 = arith.constant dense<0.000000e+00> : vector<1x32xf32>
    %101 = tpu.matmul %99, %100, %cst_97 {dimension_numbers = #tpu.dot_dimension_numbers<[1], [0], [0], [1], [0, 0, 1, 1], [], []>} : vector<1x64xf32>, vector<64x32xf32>, vector<1x32xf32> -> vector<1x32xf32>
    %c0_98 = arith.constant 0 : index
    %c0_99 = arith.constant 0 : index
    %102 = vector.load %arg10[%c0_98, %c0_99] : memref<1x32xf32, #tpu.memory_space<vmem>>, vector<1x32xf32>
    %103 = arith.addf %101, %102 : vector<1x32xf32>
    %c0_100 = arith.constant 0 : index
    %c0_101 = arith.constant 0 : index
    %104 = vector.load %arg14[%c0_100, %c0_101] : memref<1x32xf32, #tpu.memory_space<vmem>>, vector<1x32xf32>
    %c0_102 = arith.constant 0 : index
    %c0_103 = arith.constant 0 : index
    %105 = vector.load %arg15[%c0_102, %c0_103] : memref<1x32xf32, #tpu.memory_space<vmem>>, vector<1x32xf32>
    %c0_104 = arith.constant 0 : index
    %c0_105 = arith.constant 0 : index
    %106 = vector.load %arg11[%c0_104, %c0_105] : memref<32x128xf32, #tpu.memory_space<vmem>>, vector<32x128xf32>
    %c0_106 = arith.constant 0 : index
    %c0_107 = arith.constant 0 : index
    %107 = vector.load %arg12[%c0_106, %c0_107] : memref<32x128xf32, #tpu.memory_space<vmem>>, vector<32x128xf32>
    %c0_108 = arith.constant 0 : index
    %c0_109 = arith.constant 0 : index
    %108 = vector.load %arg13[%c0_108, %c0_109] : memref<1x128xf32, #tpu.memory_space<vmem>>, vector<1x128xf32>
    %cst_110 = arith.constant dense<0.000000e+00> : vector<1x128xf32>
    %109 = tpu.matmul %103, %106, %cst_110 {dimension_numbers = #tpu.dot_dimension_numbers<[1], [0], [0], [1], [0, 0, 1, 1], [], []>} : vector<1x32xf32>, vector<32x128xf32>, vector<1x128xf32> -> vector<1x128xf32>
    %cst_111 = arith.constant dense<0.000000e+00> : vector<1x128xf32>
    %110 = tpu.matmul %104, %107, %cst_111 {dimension_numbers = #tpu.dot_dimension_numbers<[1], [0], [0], [1], [0, 0, 1, 1], [], []>} : vector<1x32xf32>, vector<32x128xf32>, vector<1x128xf32> -> vector<1x128xf32>
    %111 = arith.addf %109, %110 : vector<1x128xf32>
    %112 = arith.addf %111, %108 : vector<1x128xf32>
    %113 = vector.extract_strided_slice %112 {offsets = [0, 0], sizes = [1, 32], strides = [1, 1]} : vector<1x128xf32> to vector<1x32xf32>
    %114 = arith.negf %113 : vector<1x32xf32>
    %115 = math.exp %114 : vector<1x32xf32>
    %cst_112 = arith.constant 1.000000e+00 : f32
    %116 = vector.broadcast %cst_112 : f32 to vector<1x32xf32>
    %117 = arith.addf %116, %115 : vector<1x32xf32>
    %118 = arith.divf %116, %117 : vector<1x32xf32>
    %119 = vector.extract_strided_slice %112 {offsets = [0, 32], sizes = [1, 32], strides = [1, 1]} : vector<1x128xf32> to vector<1x32xf32>
    %120 = arith.negf %119 : vector<1x32xf32>
    %121 = math.exp %120 : vector<1x32xf32>
    %cst_113 = arith.constant 1.000000e+00 : f32
    %122 = vector.broadcast %cst_113 : f32 to vector<1x32xf32>
    %123 = arith.addf %122, %121 : vector<1x32xf32>
    %124 = arith.divf %122, %123 : vector<1x32xf32>
    %125 = vector.extract_strided_slice %112 {offsets = [0, 64], sizes = [1, 32], strides = [1, 1]} : vector<1x128xf32> to vector<1x32xf32>
    %126 = math.tanh %125 : vector<1x32xf32>
    %127 = vector.extract_strided_slice %112 {offsets = [0, 96], sizes = [1, 32], strides = [1, 1]} : vector<1x128xf32> to vector<1x32xf32>
    %128 = arith.negf %127 : vector<1x32xf32>
    %129 = math.exp %128 : vector<1x32xf32>
    %cst_114 = arith.constant 1.000000e+00 : f32
    %130 = vector.broadcast %cst_114 : f32 to vector<1x32xf32>
    %131 = arith.addf %130, %129 : vector<1x32xf32>
    %132 = arith.divf %130, %131 : vector<1x32xf32>
    %133 = arith.mulf %124, %105 : vector<1x32xf32>
    %134 = arith.mulf %118, %126 : vector<1x32xf32>
    %135 = arith.addf %133, %134 : vector<1x32xf32>
    %136 = math.tanh %135 : vector<1x32xf32>
    %137 = arith.mulf %132, %136 : vector<1x32xf32>
    %c0_115 = arith.constant 0 : index
    %c0_116 = arith.constant 0 : index
    %138 = vector.load %arg16[%c0_115, %c0_116] : memref<1x32xf32, #tpu.memory_space<vmem>>, vector<1x32xf32>
    tpu.vector_store %arg16[%c0_115, %c0_116], %137 {strides = array<i32>} : memref<1x32xf32, #tpu.memory_space<vmem>>, vector<1x32xf32>,
    %c0_117 = arith.constant 0 : index
    %c0_118 = arith.constant 0 : index
    %139 = vector.load %arg17[%c0_117, %c0_118] : memref<1x32xf32, #tpu.memory_space<vmem>>, vector<1x32xf32>
    tpu.vector_store %arg17[%c0_117, %c0_118], %135 {strides = array<i32>} : memref<1x32xf32, #tpu.memory_space<vmem>>, vector<1x32xf32>,
    return
  }
}

</mosaic_0001>

<llo_original>
// kernel: tpu_custom_call.1
$region0: #{tpu_custom_call.1}
  #allocation0 [shape = 'u32[]', space=smem, size = 0x4, offset = 0x4, fixed_abs, tag = 'smem constant byte address 0x4 - core index']
  #allocation1 [shape = 'u32[144,128]{1,0:T(1,128)}', space=vmem, size = 0x12000, scoped, tag = 'internal scratch']
  %s0 = inlined_call_operand.vmem [shape: f32[64,27], index: 0, kind: input, shape index: {}]
  %s1 = inlined_call_operand.vmem [shape: f32[27,8], index: 1, kind: input, shape index: {}]
  %s2 = inlined_call_operand.vmem [shape: f32[1,8], index: 2, kind: input, shape index: {}]
  %s3 = inlined_call_operand.vmem [shape: f32[9,16,64], index: 3, kind: input, shape index: {}]
  %s4 = inlined_call_operand.vmem [shape: f32[9,8,8], index: 4, kind: input, shape index: {}]
  %s5 = inlined_call_operand.vmem [shape: f32[1,8], index: 5, kind: input, shape index: {}]
  %s6 = inlined_call_operand.vmem [shape: f32[4,16], index: 6, kind: input, shape index: {}]
  %s7 = inlined_call_operand.vmem [shape: f32[4,8,64], index: 7, kind: input, shape index: {}]
  %s8 = inlined_call_operand.vmem [shape: f32[1,64], index: 8, kind: input, shape index: {}]
  %s9 = inlined_call_operand.vmem [shape: f32[64,32], index: 9, kind: input, shape index: {}]
  %s10 = inlined_call_operand.vmem [shape: f32[1,32], index: 10, kind: input, shape index: {}]
  %s11 = inlined_call_operand.vmem [shape: f32[32,128], index: 11, kind: input, shape index: {}]
  %s12 = inlined_call_operand.vmem [shape: f32[32,128], index: 12, kind: input, shape index: {}]
  %s13 = inlined_call_operand.vmem [shape: f32[1,128], index: 13, kind: input, shape index: {}]
  %s14 = inlined_call_operand.vmem [shape: f32[1,32], index: 14, kind: input, shape index: {}]
  %s15 = inlined_call_operand.vmem [shape: f32[1,32], index: 15, kind: input, shape index: {}]
  %s16 = inlined_call_operand.hbm [shape: f32[1,32], index: 16, kind: output, shape index: {0}]
  %s17 = inlined_call_operand.hbm [shape: f32[1,32], index: 17, kind: output, shape index: {1}]
  %18 = xla_tuple %s16, %s17
  %s19 = sld [smem:[#allocation0]]
  $region82: #{tpu_custom_call.1} parent=0
    _
  %s21 = ssub.s32 1, %s19
  %s22 = scalar_select 0, %s21, %s19
  $region1: #{tpu_custom_call.1} parent=0
    #allocation2 [shape = 'u8[512]{0}', space=vmem, size = 0x400, scoped, tag = 'output window, operand 0, single buffered']
    #allocation3 [shape = 's32[1]{0}', space=sflag, size = 0x4, scoped, tag = 'scoped memory for tpu_custom_call.1']
    #allocation4 [shape = 'u8[512]{0}', space=vmem, size = 0x400, scoped, tag = 'output window, operand 1, single buffered']
    #allocation5 [shape = 's32[1]{0}', space=sflag, size = 0x4, scoped, tag = 'scoped memory for tpu_custom_call.1']
    %23 = vsyncpa [#allocation3], 0
    %24 = vsyncpa [#allocation5], 0
    // Predicated region
    $region2: #{tpu_custom_call.1} parent=1 // pred_check
      _
    $region3: #{tpu_custom_call.1} parent=1 // pred_check_branch
      %26 = sbr.rel (0) target = $region5
    $region4: #{tpu_custom_call.1} parent=1 // pred_region
      _
    $region5: #{tpu_custom_call.1} parent=1 // pred_fallthru
      _
    // Predicated region
    $region6: #{tpu_custom_call.1} parent=1 // pred_check
      _
    $region7: #{tpu_custom_call.1} parent=1 // pred_check_branch
      %28 = sbr.rel (0) target = $region9
    $region8: #{tpu_custom_call.1} parent=1 // pred_region
      _
    $region9: #{tpu_custom_call.1} parent=1 // pred_fallthru
      _
    // Predicated region
    $region10: #{tpu_custom_call.1} parent=1 // pred_check
      _
    $region11: #{tpu_custom_call.1} parent=1 // pred_check_branch
      %30 = sbr.rel (0) target = $region13
    $region12: #{tpu_custom_call.1} parent=1 // pred_region
      _
    $region13: #{tpu_custom_call.1} parent=1 // pred_fallthru
      _
    // Predicated region
    $region14: #{tpu_custom_call.1} parent=1 // pred_check
      _
    $region15: #{tpu_custom_call.1} parent=1 // pred_check_branch
      %32 = sbr.rel (0) target = $region17
    $region16: #{tpu_custom_call.1} parent=1 // pred_region
      _
    $region17: #{tpu_custom_call.1} parent=1 // pred_fallthru
      _
    // Predicated region
    $region18: #{tpu_custom_call.1} parent=1 // pred_check
      _
    $region19: #{tpu_custom_call.1} parent=1 // pred_check_branch
      %34 = sbr.rel (0) target = $region21
    $region20: #{tpu_custom_call.1} parent=1 // pred_region
      _
    $region21: #{tpu_custom_call.1} parent=1 // pred_fallthru
      _
    // Predicated region
    $region22: #{tpu_custom_call.1} parent=1 // pred_check
      _
    $region23: #{tpu_custom_call.1} parent=1 // pred_check_branch
      %36 = sbr.rel (0) target = $region25
    $region24: #{tpu_custom_call.1} parent=1 // pred_region
      _
    $region25: #{tpu_custom_call.1} parent=1 // pred_fallthru
      _
    // Predicated region
    $region26: #{tpu_custom_call.1} parent=1 // pred_check
      _
    $region27: #{tpu_custom_call.1} parent=1 // pred_check_branch
      %38 = sbr.rel (0) target = $region29
    $region28: #{tpu_custom_call.1} parent=1 // pred_region
      _
    $region29: #{tpu_custom_call.1} parent=1 // pred_fallthru
      _
    // Predicated region
    $region30: #{tpu_custom_call.1} parent=1 // pred_check
      _
    $region31: #{tpu_custom_call.1} parent=1 // pred_check_branch
      %40 = sbr.rel (0) target = $region33
    $region32: #{tpu_custom_call.1} parent=1 // pred_region
      _
    $region33: #{tpu_custom_call.1} parent=1 // pred_fallthru
      _
    // Predicated region
    $region34: #{tpu_custom_call.1} parent=1 // pred_check
      _
    $region35: #{tpu_custom_call.1} parent=1 // pred_check_branch
      %42 = sbr.rel (0) target = $region37
    $region36: #{tpu_custom_call.1} parent=1 // pred_region
      _
    $region37: #{tpu_custom_call.1} parent=1 // pred_fallthru
      _
    // Predicated region
    $region38: #{tpu_custom_call.1} parent=1 // pred_check
      _
    $region39: #{tpu_custom_call.1} parent=1 // pred_check_branch
      %44 = sbr.rel (0) target = $region41
    $region40: #{tpu_custom_call.1} parent=1 // pred_region
      _
    $region41: #{tpu_custom_call.1} parent=1 // pred_fallthru
      _
    // Predicated region
    $region42: #{tpu_custom_call.1} parent=1 // pred_check
      _
    $region43: #{tpu_custom_call.1} parent=1 // pred_check_branch
      %46 = sbr.rel (0) target = $region45
    $region44: #{tpu_custom_call.1} parent=1 // pred_region
      _
    $region45: #{tpu_custom_call.1} parent=1 // pred_fallthru
      _
    // Predicated region
    $region46: #{tpu_custom_call.1} parent=1 // pred_check
      _
    $region47: #{tpu_custom_call.1} parent=1 // pred_check_branch
      %48 = sbr.rel (0) target = $region49
    $region48: #{tpu_custom_call.1} parent=1 // pred_region
      _
    $region49: #{tpu_custom_call.1} parent=1 // pred_fallthru
      _
    // Predicated region
    $region50: #{tpu_custom_call.1} parent=1 // pred_check
      _
    $region51: #{tpu_custom_call.1} parent=1 // pred_check_branch
      %50 = sbr.rel (0) target = $region53
    $region52: #{tpu_custom_call.1} parent=1 // pred_region
      _
    $region53: #{tpu_custom_call.1} parent=1 // pred_fallthru
      _
    // Predicated region
    $region54: #{tpu_custom_call.1} parent=1 // pred_check
      _
    $region55: #{tpu_custom_call.1} parent=1 // pred_check_branch
      %52 = sbr.rel (0) target = $region57
    $region56: #{tpu_custom_call.1} parent=1 // pred_region
      _
    $region57: #{tpu_custom_call.1} parent=1 // pred_fallthru
      _
    // Predicated region
    $region58: #{tpu_custom_call.1} parent=1 // pred_check
      _
    $region59: #{tpu_custom_call.1} parent=1 // pred_check_branch
      %54 = sbr.rel (0) target = $region61
    $region60: #{tpu_custom_call.1} parent=1 // pred_region
      _
    $region61: #{tpu_custom_call.1} parent=1 // pred_fallthru
      _
    // Predicated region
    $region62: #{tpu_custom_call.1} parent=1 // pred_check
      _
    $region63: #{tpu_custom_call.1} parent=1 // pred_check_branch
      %56 = sbr.rel (0) target = $region65
    $region64: #{tpu_custom_call.1} parent=1 // pred_region
      _
    $region65: #{tpu_custom_call.1} parent=1 // pred_fallthru
      _
    %v57 = vld [vmem:[%s0] sm:$0xff]
    %v58 = vld [vmem:[%s0 + $0x8] sm:$0xff]
    %v59 = vld [vmem:[%s0 + $0x10] sm:$0xff]
    %v60 = vld [vmem:[%s0 + $0x18] sm:$0xff]
    %v61 = vld [vmem:[%s0 + $0x20] sm:$0xff]
    %v62 = vld [vmem:[%s0 + $0x28] sm:$0xff]
    %v63 = vld [vmem:[%s0 + $0x30] sm:$0xff]
    %v64 = vld [vmem:[%s0 + $0x38] sm:$0xff]
    %v65 = vld [vmem:[%s1] sm:$0xff]
    %v66 = vld [vmem:[%s1 + $0x8] sm:$0xff]
    %v67 = vld [vmem:[%s1 + $0x10] sm:$0xff]
    %v68 = vld [vmem:[%s1 + $0x18] sm:$0x7]
    %v69 = vld [vmem:[%s2] sm:$0x1]
    %v71 = vlaneseq
    %v72 = vshrl.u32 %v71, 7
    %v73 = vsub.s32 0, %v72
    %v74 = vrot.slane %v69, %v73
    %vm76 = vcmask 220160
    %v78 = vsel %vm76, %v57, 0
    %v81 = vsel %vm76, %v58, 0
    %v84 = vsel %vm76, %v59, 0
    %v87 = vsel %vm76, %v60, 0
    %v90 = vsel %vm76, %v61, 0
    %v93 = vsel %vm76, %v62, 0
    %v96 = vsel %vm76, %v63, 0
    %v99 = vsel %vm76, %v64, 0
    %vm101 = vcmask 1042432
    %v103 = vsel %vm101, %v68, 0
    %105 = vmatprep.subr.mxu0 0.0
    %106 = vmatpush1.msra.mxu0 0.0
    %107 = vmatprep.subr.mxu0 0.0
    %108 = vmatpush1.msra.mxu0 0.0
    %109 = vmatprep.subr.mxu0 0.0
    %110 = vmatpush1.msra.mxu0 0.0
    %111 = vmatprep.subr.mxu0 0.0
    %112 = vmatpush1.msra.mxu0 0.0
    %113 = vmatprep.subr.mxu0 0.0
    %114 = vmatpush1.msra.mxu0 0.0
    %115 = vmatprep.subr.mxu0 0.0
    %116 = vmatpush1.msra.mxu0 0.0
    %117 = vmatprep.subr.mxu0 0.0
    %118 = vmatpush1.msra.mxu0 0.0
    %119 = vmatprep.subr.mxu0 0.0
    %120 = vmatpush1.msra.mxu0 0.0
    %121 = vmatprep.subr.mxu0 0.0
    %122 = vmatpush1.msra.mxu0 0.0
    %123 = vmatprep.subr.mxu0 0.0
    %124 = vmatpush1.msra.mxu0 0.0
    %125 = vmatprep.subr.mxu0 0.0
    %126 = vmatpush1.msra.mxu0 0.0
    %127 = vmatprep.subr.mxu0 0.0
    %128 = vmatpush1.msra.mxu0 0.0
    %129 = vmatprep.subr.mxu0 0.0
    %130 = vmatpush1.msra.mxu0 %v103
    %131 = vmatprep.subr.mxu0 0.0
    %132 = vmatpush1.msra.mxu0 %v67
    %133 = vmatprep.subr.mxu0 0.0
    %134 = vmatpush1.msra.mxu0 %v66
    %135 = vmatprep.subr.mxu0 0.0
    %136 = vmatpush1.msra.mxu0 %v65
    %137 = vmatprep.subr.mxu0 0.0
    %138 = vmatpush2.msra.mxu0 0.0
    %139 = vmatprep.subr.mxu0 0.0
    %140 = vmatpush2.msra.mxu0 0.0
    %141 = vmatprep.subr.mxu0 0.0
    %142 = vmatpush2.msra.mxu0 0.0
    %143 = vmatprep.subr.mxu0 0.0
    %144 = vmatpush2.msra.mxu0 0.0
    %145 = vmatprep.subr.mxu0 0.0
    %146 = vmatpush2.msra.mxu0 0.0
    %147 = vmatprep.subr.mxu0 0.0
    %148 = vmatpush2.msra.mxu0 0.0
    %149 = vmatprep.subr.mxu0 0.0
    %150 = vmatpush2.msra.mxu0 0.0
    %151 = vmatprep.subr.mxu0 0.0
    %152 = vmatpush2.msra.mxu0 0.0
    %153 = vmatprep.subr.mxu0 0.0
    %154 = vmatpush2.msra.mxu0 0.0
    %155 = vmatprep.subr.mxu0 0.0
    %156 = vmatpush2.msra.mxu0 0.0
    %157 = vmatprep.subr.mxu0 0.0
    %158 = vmatpush2.msra.mxu0 0.0
    %159 = vmatprep.subr.mxu0 0.0
    %160 = vmatpush2.msra.mxu0 0.0
    %161 = vmatprep.subr.mxu0 0.0
    %162 = vmatpush2.msra.mxu0 0.0
    %163 = vmatprep.subr.mxu0 0.0
    %164 = vmatpush2.msra.mxu0 0.0
    %165 = vmatprep.subr.mxu0 0.0
    %166 = vmatpush2.msra.mxu0 0.0
    %167 = vmatprep.subr.mxu0 0.0
    %168 = vmatpush2.msra.mxu0 0.0
    %169 = vmatprep.mubr.f32.mxu0 0.0
    %170 = vmatmul.mubr.f32.gmra.mxu0 %v78
    %v171 = vpop.f32.mrf.mxu0
    %v172 = vadd.f32 %v74, %v171
    %v173 = vpop.f32.mrf.mxu0
    %174 = vmatprep.mubr.f32.mxu0 0.0
    %175 = vmatmul.mubr.f32.gmra.mxu0 %v81
    %v176 = vpop.f32.mrf.mxu0
    %v177 = vadd.f32 %v74, %v176
    %v178 = vpop.f32.mrf.mxu0
    %179 = vmatprep.mubr.f32.mxu0 0.0
    %180 = vmatmul.mubr.f32.gmra.mxu0 %v84
    %v181 = vpop.f32.mrf.mxu0
    %v182 = vadd.f32 %v74, %v181
    %v183 = vpop.f32.mrf.mxu0
    %184 = vmatprep.mubr.f32.mxu0 0.0
    %185 = vmatmul.mubr.f32.gmra.mxu0 %v87
    %v186 = vpop.f32.mrf.mxu0
    %v187 = vadd.f32 %v74, %v186
    %v188 = vpop.f32.mrf.mxu0
    %189 = vmatprep.mubr.f32.mxu0 0.0
    %190 = vmatmul.mubr.f32.gmra.mxu0 %v90
    %v191 = vpop.f32.mrf.mxu0
    %v192 = vadd.f32 %v74, %v191
    %v193 = vpop.f32.mrf.mxu0
    %194 = vmatprep.mubr.f32.mxu0 0.0
    %195 = vmatmul.mubr.f32.gmra.mxu0 %v93
    %v196 = vpop.f32.mrf.mxu0
    %v197 = vadd.f32 %v74, %v196
    %v198 = vpop.f32.mrf.mxu0
    %199 = vmatprep.mubr.f32.mxu0 0.0
    %200 = vmatmul.mubr.f32.gmra.mxu0 %v96
    %v201 = vpop.f32.mrf.mxu0
    %v202 = vadd.f32 %v74, %v201
    %v203 = vpop.f32.mrf.mxu0
    %204 = vmatprep.mubr.f32.mxu0 0.0
    %205 = vmatmul.mubr.f32.gmra.mxu0 %v99
    %v206 = vpop.f32.mrf.mxu0
    %v207 = vadd.f32 %v74, %v206
    %v208 = vpop.f32.mrf.mxu0
    %209 = vdwg.mxu0
    %v210 = vmax.f32 %v172, 0.0
    %v211 = vmax.f32 %v177, 0.0
    %v212 = vmax.f32 %v182, 0.0
    %v213 = vmax.f32 %v187, 0.0
    %v214 = vmax.f32 %v192, 0.0
    %v215 = vmax.f32 %v197, 0.0
    %v216 = vmax.f32 %v202, 0.0
    %v217 = vmax.f32 %v207, 0.0
    %v218 = vld [vmem:[%s3] sm:$0xff]
    %v219 = vld [vmem:[%s3 + $0x8] sm:$0xff]
    %vm220 = vcmask 523264
    %v222 = vsel %vm220, %v218, 0
    %v225 = vsel %vm220, %v219, 0
    %227 = vmatprep.subr.mxu0 0.0
    %228 = vmatpush1.msra.mxu0 0.0
    %229 = vmatprep.subr.mxu0 0.0
    %230 = vmatpush1.msra.mxu0 0.0
    %231 = vmatprep.subr.mxu0 0.0
    %232 = vmatpush1.msra.mxu0 0.0
    %233 = vmatprep.subr.mxu0 0.0
    %234 = vmatpush1.msra.mxu0 0.0
    %235 = vmatprep.subr.mxu0 0.0
    %236 = vmatpush1.msra.mxu0 0.0
    %237 = vmatprep.subr.mxu0 0.0
    %238 = vmatpush1.msra.mxu0 0.0
    %239 = vmatprep.subr.mxu0 0.0
    %240 = vmatpush1.msra.mxu0 0.0
    %241 = vmatprep.subr.mxu0 0.0
    %242 = vmatpush1.msra.mxu0 0.0
    %243 = vmatprep.subr.mxu0 0.0
    %244 = vmatpush1.msra.mxu0 %v217
    %245 = vmatprep.subr.mxu0 0.0
    %246 = vmatpush1.msra.mxu0 %v216
    %247 = vmatprep.subr.mxu0 0.0
    %248 = vmatpush1.msra.mxu0 %v215
    %249 = vmatprep.subr.mxu0 0.0
    %250 = vmatpush1.msra.mxu0 %v214
    %251 = vmatprep.subr.mxu0 0.0
    %252 = vmatpush1.msra.mxu0 %v213
    %253 = vmatprep.subr.mxu0 0.0
    %254 = vmatpush1.msra.mxu0 %v212
    %255 = vmatprep.subr.mxu0 0.0
    %256 = vmatpush1.msra.mxu0 %v211
    %257 = vmatprep.subr.mxu0 0.0
    %258 = vmatpush1.msra.mxu0 %v210
    %259 = vmatprep.subr.mxu0 0.0
    %260 = vmatpush2.msra.mxu0 0.0
    %261 = vmatprep.subr.mxu0 0.0
    %262 = vmatpush2.msra.mxu0 0.0
    %263 = vmatprep.subr.mxu0 0.0
    %264 = vmatpush2.msra.mxu0 0.0
    %265 = vmatprep.subr.mxu0 0.0
    %266 = vmatpush2.msra.mxu0 0.0
    %267 = vmatprep.subr.mxu0 0.0
    %268 = vmatpush2.msra.mxu0 0.0
    %269 = vmatprep.subr.mxu0 0.0
    %270 = vmatpush2.msra.mxu0 0.0
    %271 = vmatprep.subr.mxu0 0.0
    %272 = vmatpush2.msra.mxu0 0.0
    %273 = vmatprep.subr.mxu0 0.0
    %274 = vmatpush2.msra.mxu0 0.0
    %275 = vmatprep.subr.mxu0 0.0
    %276 = vmatpush2.msra.mxu0 0.0
    %277 = vmatprep.subr.mxu0 0.0
    %278 = vmatpush2.msra.mxu0 0.0
    %279 = vmatprep.subr.mxu0 0.0
    %280 = vmatpush2.msra.mxu0 0.0
    %281 = vmatprep.subr.mxu0 0.0
    %282 = vmatpush2.msra.mxu0 0.0
    %283 = vmatprep.subr.mxu0 0.0
    %284 = vmatpush2.msra.mxu0 0.0
    %285 = vmatprep.subr.mxu0 0.0
    %286 = vmatpush2.msra.mxu0 0.0
    %287 = vmatprep.subr.mxu0 0.0
    %288 = vmatpush2.msra.mxu0 0.0
    %289 = vmatprep.subr.mxu0 0.0
    %290 = vmatpush2.msra.mxu0 0.0
    %291 = vmatprep.mubr.f32.mxu0 0.0
    %292 = vmatmul.mubr.f32.gmra.mxu0 %v222
    %v293 = vpop.f32.mrf.mxu0
    %v294 = vadd.f32 0.0, %v293
    %v295 = vpop.f32.mrf.mxu0
    %296 = vmatprep.mubr.f32.mxu0 0.0
    %297 = vmatmul.mubr.f32.gmra.mxu0 %v225
    %v298 = vpop.f32.mrf.mxu0
    %v299 = vadd.f32 0.0, %v298
    %v300 = vpop.f32.mrf.mxu0
    %301 = vdwg.mxu0
    %v302 = vld [vmem:[%s4] sm:$0xff]
    %s303 = scalar_lea.vmem %s3, 16
    %v304 = vld [vmem:[%s303] sm:$0xff]
    %v305 = vld [vmem:[%s303 + $0x8] sm:$0xff]
    %v307 = vsel %vm220, %v304, 0
    %v310 = vsel %vm220, %v305, 0
    %312 = vmatprep.subr.mxu0 0.0
    %313 = vmatpush1.msra.mxu0 0.0
    %314 = vmatprep.subr.mxu0 0.0
    %315 = vmatpush1.msra.mxu0 0.0
    %316 = vmatprep.subr.mxu0 0.0
    %317 = vmatpush1.msra.mxu0 0.0
    %318 = vmatprep.subr.mxu0 0.0
    %319 = vmatpush1.msra.mxu0 0.0
    %320 = vmatprep.subr.mxu0 0.0
    %321 = vmatpush1.msra.mxu0 0.0
    %322 = vmatprep.subr.mxu0 0.0
    %323 = vmatpush1.msra.mxu0 0.0
    %324 = vmatprep.subr.mxu0 0.0
    %325 = vmatpush1.msra.mxu0 0.0
    %326 = vmatprep.subr.mxu0 0.0
    %327 = vmatpush1.msra.mxu0 0.0
    %328 = vmatprep.subr.mxu0 0.0
    %329 = vmatpush1.msra.mxu0 %v217
    %330 = vmatprep.subr.mxu0 0.0
    %331 = vmatpush1.msra.mxu0 %v216
    %332 = vmatprep.subr.mxu0 0.0
    %333 = vmatpush1.msra.mxu0 %v215
    %334 = vmatprep.subr.mxu0 0.0
    %335 = vmatpush1.msra.mxu0 %v214
    %336 = vmatprep.subr.mxu0 0.0
    %337 = vmatpush1.msra.mxu0 %v213
    %338 = vmatprep.subr.mxu0 0.0
    %339 = vmatpush1.msra.mxu0 %v212
    %340 = vmatprep.subr.mxu0 0.0
    %341 = vmatpush1.msra.mxu0 %v211
    %342 = vmatprep.subr.mxu0 0.0
    %343 = vmatpush1.msra.mxu0 %v210
    %344 = vmatprep.subr.mxu0 0.0
    %345 = vmatpush2.msra.mxu0 0.0
    %346 = vmatprep.subr.mxu0 0.0
    %347 = vmatpush2.msra.mxu0 0.0
    %348 = vmatprep.subr.mxu0 0.0
    %349 = vmatpush2.msra.mxu0 0.0
    %350 = vmatprep.subr.mxu0 0.0
    %351 = vmatpush2.msra.mxu0 0.0
    %352 = vmatprep.subr.mxu0 0.0
    %353 = vmatpush2.msra.mxu0 0.0
    %354 = vmatprep.subr.mxu0 0.0
    %355 = vmatpush2.msra.mxu0 0.0
    %356 = vmatprep.subr.mxu0 0.0
    %357 = vmatpush2.msra.mxu0 0.0
    %358 = vmatprep.subr.mxu0 0.0
    %359 = vmatpush2.msra.mxu0 0.0
    %360 = vmatprep.subr.mxu0 0.0
    %361 = vmatpush2.msra.mxu0 0.0
    %362 = vmatprep.subr.mxu0 0.0
    %363 = vmatpush2.msra.mxu0 0.0
    %364 = vmatprep.subr.mxu0 0.0
    %365 = vmatpush2.msra.mxu0 0.0
    %366 = vmatprep.subr.mxu0 0.0
    %367 = vmatpush2.msra.mxu0 0.0
    %368 = vmatprep.subr.mxu0 0.0
    %369 = vmatpush2.msra.mxu0 0.0
    %370 = vmatprep.subr.mxu0 0.0
    %371 = vmatpush2.msra.mxu0 0.0
    %372 = vmatprep.subr.mxu0 0.0
    %373 = vmatpush2.msra.mxu0 0.0
    %374 = vmatprep.subr.mxu0 0.0
    %375 = vmatpush2.msra.mxu0 0.0
    %376 = vmatprep.mubr.f32.mxu0 0.0
    %377 = vmatmul.mubr.f32.gmra.mxu0 %v307
    %v378 = vpop.f32.mrf.mxu0
    %v379 = vadd.f32 0.0, %v378
    %v380 = vpop.f32.mrf.mxu0
    %381 = vmatprep.mubr.f32.mxu0 0.0
    %382 = vmatmul.mubr.f32.gmra.mxu0 %v310
    %v383 = vpop.f32.mrf.mxu0
    %v384 = vadd.f32 0.0, %v383
    %v385 = vpop.f32.mrf.mxu0
    %386 = vdwg.mxu0
    %s387 = scalar_lea.vmem %s4, 8
    %v388 = vld [vmem:[%s387] sm:$0xff]
    %vm389 = vcmask 64512
    %v391 = vsel %vm389, %v379, 0
    %v394 = vsel %vm389, %v384, 0
    %396 = vmatprep.subr.mxu0 0.0
    %397 = vmatpush1.msra.mxu0 0.0
    %398 = vmatprep.subr.mxu0 0.0
    %399 = vmatpush1.msra.mxu0 0.0
    %400 = vmatprep.subr.mxu0 0.0
    %401 = vmatpush1.msra.mxu0 0.0
    %402 = vmatprep.subr.mxu0 0.0
    %403 = vmatpush1.msra.mxu0 0.0
    %404 = vmatprep.subr.mxu0 0.0
    %405 = vmatpush1.msra.mxu0 0.0
    %406 = vmatprep.subr.mxu0 0.0
    %407 = vmatpush1.msra.mxu0 0.0
    %408 = vmatprep.subr.mxu0 0.0
    %409 = vmatpush1.msra.mxu0 0.0
    %410 = vmatprep.subr.mxu0 0.0
    %411 = vmatpush1.msra.mxu0 0.0
    %412 = vmatprep.subr.mxu0 0.0
    %413 = vmatpush1.msra.mxu0 0.0
    %414 = vmatprep.subr.mxu0 0.0
    %415 = vmatpush1.msra.mxu0 0.0
    %416 = vmatprep.subr.mxu0 0.0
    %417 = vmatpush1.msra.mxu0 0.0
    %418 = vmatprep.subr.mxu0 0.0
    %419 = vmatpush1.msra.mxu0 0.0
    %420 = vmatprep.subr.mxu0 0.0
    %421 = vmatpush1.msra.mxu0 0.0
    %422 = vmatprep.subr.mxu0 0.0
    %423 = vmatpush1.msra.mxu0 0.0
    %424 = vmatprep.subr.mxu0 0.0
    %425 = vmatpush1.msra.mxu0 0.0
    %426 = vmatprep.subr.mxu0 0.0
    %427 = vmatpush1.msra.mxu0 %v388
    %428 = vmatprep.subr.mxu0 0.0
    %429 = vmatpush2.msra.mxu0 0.0
    %430 = vmatprep.subr.mxu0 0.0
    %431 = vmatpush2.msra.mxu0 0.0
    %432 = vmatprep.subr.mxu0 0.0
    %433 = vmatpush2.msra.mxu0 0.0
    %434 = vmatprep.subr.mxu0 0.0
    %435 = vmatpush2.msra.mxu0 0.0
    %436 = vmatprep.subr.mxu0 0.0
    %437 = vmatpush2.msra.mxu0 0.0
    %438 = vmatprep.subr.mxu0 0.0
    %439 = vmatpush2.msra.mxu0 0.0
    %440 = vmatprep.subr.mxu0 0.0
    %441 = vmatpush2.msra.mxu0 0.0
    %442 = vmatprep.subr.mxu0 0.0
    %443 = vmatpush2.msra.mxu0 0.0
    %444 = vmatprep.subr.mxu0 0.0
    %445 = vmatpush2.msra.mxu0 0.0
    %446 = vmatprep.subr.mxu0 0.0
    %447 = vmatpush2.msra.mxu0 0.0
    %448 = vmatprep.subr.mxu0 0.0
    %449 = vmatpush2.msra.mxu0 0.0
    %450 = vmatprep.subr.mxu0 0.0
    %451 = vmatpush2.msra.mxu0 0.0
    %452 = vmatprep.subr.mxu0 0.0
    %453 = vmatpush2.msra.mxu0 0.0
    %454 = vmatprep.subr.mxu0 0.0
    %455 = vmatpush2.msra.mxu0 0.0
    %456 = vmatprep.subr.mxu0 0.0
    %457 = vmatpush2.msra.mxu0 0.0
    %458 = vmatprep.subr.mxu0 0.0
    %459 = vmatpush2.msra.mxu0 0.0
    %460 = vmatprep.mubr.f32.mxu0 0.0
    %461 = vmatmul.mubr.f32.gmra.mxu0 %v391
    %v462 = vpop.f32.mrf.mxu0
    %v463 = vadd.f32 0.0, %v462
    %v464 = vpop.f32.mrf.mxu0
    %465 = vmatprep.mubr.f32.mxu0 0.0
    %466 = vmatmul.mubr.f32.gmra.mxu0 %v394
    %v467 = vpop.f32.mrf.mxu0
    %v468 = vadd.f32 0.0, %v467
    %v469 = vpop.f32.mrf.mxu0
    %470 = vdwg.mxu0
    %v472 = vsel %vm389, %v294, 0
    %v475 = vsel %vm389, %v299, 0
    %477 = vmatprep.subr.mxu0 0.0
    %478 = vmatpush1.msra.mxu0 0.0
    %479 = vmatprep.subr.mxu0 0.0
    %480 = vmatpush1.msra.mxu0 0.0
    %481 = vmatprep.subr.mxu0 0.0
    %482 = vmatpush1.msra.mxu0 0.0
    %483 = vmatprep.subr.mxu0 0.0
    %484 = vmatpush1.msra.mxu0 0.0
    %485 = vmatprep.subr.mxu0 0.0
    %486 = vmatpush1.msra.mxu0 0.0
    %487 = vmatprep.subr.mxu0 0.0
    %488 = vmatpush1.msra.mxu0 0.0
    %489 = vmatprep.subr.mxu0 0.0
    %490 = vmatpush1.msra.mxu0 0.0
    %491 = vmatprep.subr.mxu0 0.0
    %492 = vmatpush1.msra.mxu0 0.0
    %493 = vmatprep.subr.mxu0 0.0
    %494 = vmatpush1.msra.mxu0 0.0
    %495 = vmatprep.subr.mxu0 0.0
    %496 = vmatpush1.msra.mxu0 0.0
    %497 = vmatprep.subr.mxu0 0.0
    %498 = vmatpush1.msra.mxu0 0.0
    %499 = vmatprep.subr.mxu0 0.0
    %500 = vmatpush1.msra.mxu0 0.0
    %501 = vmatprep.subr.mxu0 0.0
    %502 = vmatpush1.msra.mxu0 0.0
    %503 = vmatprep.subr.mxu0 0.0
    %504 = vmatpush1.msra.mxu0 0.0
    %505 = vmatprep.subr.mxu0 0.0
    %506 = vmatpush1.msra.mxu0 0.0
    %507 = vmatprep.subr.mxu0 0.0
    %508 = vmatpush1.msra.mxu0 %v302
    %509 = vmatprep.subr.mxu0 0.0
    %510 = vmatpush2.msra.mxu0 0.0
    %511 = vmatprep.subr.mxu0 0.0
    %512 = vmatpush2.msra.mxu0 0.0
    %513 = vmatprep.subr.mxu0 0.0
    %514 = vmatpush2.msra.mxu0 0.0
    %515 = vmatprep.subr.mxu0 0.0
    %516 = vmatpush2.msra.mxu0 0.0
    %517 = vmatprep.subr.mxu0 0.0
    %518 = vmatpush2.msra.mxu0 0.0
    %519 = vmatprep.subr.mxu0 0.0
    %520 = vmatpush2.msra.mxu0 0.0
    %521 = vmatprep.subr.mxu0 0.0
    %522 = vmatpush2.msra.mxu0 0.0
    %523 = vmatprep.subr.mxu0 0.0
    %524 = vmatpush2.msra.mxu0 0.0
    %525 = vmatprep.subr.mxu0 0.0
    %526 = vmatpush2.msra.mxu0 0.0
    %527 = vmatprep.subr.mxu0 0.0
    %528 = vmatpush2.msra.mxu0 0.0
    %529 = vmatprep.subr.mxu0 0.0
    %530 = vmatpush2.msra.mxu0 0.0
    %531 = vmatprep.subr.mxu0 0.0
    %532 = vmatpush2.msra.mxu0 0.0
    %533 = vmatprep.subr.mxu0 0.0
    %534 = vmatpush2.msra.mxu0 0.0
    %535 = vmatprep.subr.mxu0 0.0
    %536 = vmatpush2.msra.mxu0 0.0
    %537 = vmatprep.subr.mxu0 0.0
    %538 = vmatpush2.msra.mxu0 0.0
    %539 = vmatprep.subr.mxu0 0.0
    %540 = vmatpush2.msra.mxu0 0.0
    %541 = vmatprep.mubr.f32.mxu0 0.0
    %542 = vmatmul.mubr.f32.gmra.mxu0 %v472
    %v543 = vpop.f32.mrf.mxu0
    %v544 = vadd.f32 %v463, %v543
    %v545 = vpop.f32.mrf.mxu0
    %546 = vmatprep.mubr.f32.mxu0 0.0
    %547 = vmatmul.mubr.f32.gmra.mxu0 %v475
    %v548 = vpop.f32.mrf.mxu0
    %v549 = vadd.f32 %v468, %v548
    %v550 = vpop.f32.mrf.mxu0
    %551 = vdwg.mxu0
    %s552 = scalar_lea.vmem %s3, 32
    %v553 = vld [vmem:[%s552] sm:$0xff]
    %v554 = vld [vmem:[%s552 + $0x8] sm:$0xff]
    %v556 = vsel %vm220, %v553, 0
    %v559 = vsel %vm220, %v554, 0
    %561 = vmatprep.subr.mxu0 0.0
    %562 = vmatpush1.msra.mxu0 0.0
    %563 = vmatprep.subr.mxu0 0.0
    %564 = vmatpush1.msra.mxu0 0.0
    %565 = vmatprep.subr.mxu0 0.0
    %566 = vmatpush1.msra.mxu0 0.0
    %567 = vmatprep.subr.mxu0 0.0
    %568 = vmatpush1.msra.mxu0 0.0
    %569 = vmatprep.subr.mxu0 0.0
    %570 = vmatpush1.msra.mxu0 0.0
    %571 = vmatprep.subr.mxu0 0.0
    %572 = vmatpush1.msra.mxu0 0.0
    %573 = vmatprep.subr.mxu0 0.0
    %574 = vmatpush1.msra.mxu0 0.0
    %575 = vmatprep.subr.mxu0 0.0
    %576 = vmatpush1.msra.mxu0 0.0
    %577 = vmatprep.subr.mxu0 0.0
    %578 = vmatpush1.msra.mxu0 %v217
    %579 = vmatprep.subr.mxu0 0.0
    %580 = vmatpush1.msra.mxu0 %v216
    %581 = vmatprep.subr.mxu0 0.0
    %582 = vmatpush1.msra.mxu0 %v215
    %583 = vmatprep.subr.mxu0 0.0
    %584 = vmatpush1.msra.mxu0 %v214
    %585 = vmatprep.subr.mxu0 0.0
    %586 = vmatpush1.msra.mxu0 %v213
    %587 = vmatprep.subr.mxu0 0.0
    %588 = vmatpush1.msra.mxu0 %v212
    %589 = vmatprep.subr.mxu0 0.0
    %590 = vmatpush1.msra.mxu0 %v211
    %591 = vmatprep.subr.mxu0 0.0
    %592 = vmatpush1.msra.mxu0 %v210
    %593 = vmatprep.subr.mxu0 0.0
    %594 = vmatpush2.msra.mxu0 0.0
    %595 = vmatprep.subr.mxu0 0.0
    %596 = vmatpush2.msra.mxu0 0.0
    %597 = vmatprep.subr.mxu0 0.0
    %598 = vmatpush2.msra.mxu0 0.0
    %599 = vmatprep.subr.mxu0 0.0
    %600 = vmatpush2.msra.mxu0 0.0
    %601 = vmatprep.subr.mxu0 0.0
    %602 = vmatpush2.msra.mxu0 0.0
    %603 = vmatprep.subr.mxu0 0.0
    %604 = vmatpush2.msra.mxu0 0.0
    %605 = vmatprep.subr.mxu0 0.0
    %606 = vmatpush2.msra.mxu0 0.0
    %607 = vmatprep.subr.mxu0 0.0
    %608 = vmatpush2.msra.mxu0 0.0
    %609 = vmatprep.subr.mxu0 0.0
    %610 = vmatpush2.msra.mxu0 0.0
    %611 = vmatprep.subr.mxu0 0.0
    %612 = vmatpush2.msra.mxu0 0.0
    %613 = vmatprep.subr.mxu0 0.0
    %614 = vmatpush2.msra.mxu0 0.0
    %615 = vmatprep.subr.mxu0 0.0
    %616 = vmatpush2.msra.mxu0 0.0
    %617 = vmatprep.subr.mxu0 0.0
    %618 = vmatpush2.msra.mxu0 0.0
    %619 = vmatprep.subr.mxu0 0.0
    %620 = vmatpush2.msra.mxu0 0.0
    %621 = vmatprep.subr.mxu0 0.0
    %622 = vmatpush2.msra.mxu0 0.0
    %623 = vmatprep.subr.mxu0 0.0
    %624 = vmatpush2.msra.mxu0 0.0
    %625 = vmatprep.mubr.f32.mxu0 0.0
    %626 = vmatmul.mubr.f32.gmra.mxu0 %v556
    %v627 = vpop.f32.mrf.mxu0
    %v628 = vadd.f32 0.0, %v627
    %v629 = vpop.f32.mrf.mxu0
    %630 = vmatprep.mubr.f32.mxu0 0.0
    %631 = vmatmul.mubr.f32.gmra.mxu0 %v559
    %v632 = vpop.f32.mrf.mxu0
    %v633 = vadd.f32 0.0, %v632
    %v634 = vpop.f32.mrf.mxu0
    %635 = vdwg.mxu0
    %s636 = scalar_lea.vmem %s4, 16
    %v637 = vld [vmem:[%s636] sm:$0xff]
    %v639 = vsel %vm389, %v628, 0
    %v642 = vsel %vm389, %v633, 0
    %644 = vmatprep.subr.mxu0 0.0
    %645 = vmatpush1.msra.mxu0 0.0
    %646 = vmatprep.subr.mxu0 0.0
    %647 = vmatpush1.msra.mxu0 0.0
    %648 = vmatprep.subr.mxu0 0.0
    %649 = vmatpush1.msra.mxu0 0.0
    %650 = vmatprep.subr.mxu0 0.0
    %651 = vmatpush1.msra.mxu0 0.0
    %652 = vmatprep.subr.mxu0 0.0
    %653 = vmatpush1.msra.mxu0 0.0
    %654 = vmatprep.subr.mxu0 0.0
    %655 = vmatpush1.msra.mxu0 0.0
    %656 = vmatprep.subr.mxu0 0.0
    %657 = vmatpush1.msra.mxu0 0.0
    %658 = vmatprep.subr.mxu0 0.0
    %659 = vmatpush1.msra.mxu0 0.0
    %660 = vmatprep.subr.mxu0 0.0
    %661 = vmatpush1.msra.mxu0 0.0
    %662 = vmatprep.subr.mxu0 0.0
    %663 = vmatpush1.msra.mxu0 0.0
    %664 = vmatprep.subr.mxu0 0.0
    %665 = vmatpush1.msra.mxu0 0.0
    %666 = vmatprep.subr.mxu0 0.0
    %667 = vmatpush1.msra.mxu0 0.0
    %668 = vmatprep.subr.mxu0 0.0
    %669 = vmatpush1.msra.mxu0 0.0
    %670 = vmatprep.subr.mxu0 0.0
    %671 = vmatpush1.msra.mxu0 0.0
    %672 = vmatprep.subr.mxu0 0.0
    %673 = vmatpush1.msra.mxu0 0.0
    %674 = vmatprep.subr.mxu0 0.0
    %675 = vmatpush1.msra.mxu0 %v637
    %676 = vmatprep.subr.mxu0 0.0
    %677 = vmatpush2.msra.mxu0 0.0
    %678 = vmatprep.subr.mxu0 0.0
    %679 = vmatpush2.msra.mxu0 0.0
    %680 = vmatprep.subr.mxu0 0.0
    %681 = vmatpush2.msra.mxu0 0.0
    %682 = vmatprep.subr.mxu0 0.0
    %683 = vmatpush2.msra.mxu0 0.0
    %684 = vmatprep.subr.mxu0 0.0
    %685 = vmatpush2.msra.mxu0 0.0
    %686 = vmatprep.subr.mxu0 0.0
    %687 = vmatpush2.msra.mxu0 0.0
    %688 = vmatprep.subr.mxu0 0.0
    %689 = vmatpush2.msra.mxu0 0.0
    %690 = vmatprep.subr.mxu0 0.0
    %691 = vmatpush2.msra.mxu0 0.0
    %692 = vmatprep.subr.mxu0 0.0
    %693 = vmatpush2.msra.mxu0 0.0
    %694 = vmatprep.subr.mxu0 0.0
    %695 = vmatpush2.msra.mxu0 0.0
    %696 = vmatprep.subr.mxu0 0.0
    %697 = vmatpush2.msra.mxu0 0.0
    %698 = vmatprep.subr.mxu0 0.0
    %699 = vmatpush2.msra.mxu0 0.0
    %700 = vmatprep.subr.mxu0 0.0
    %701 = vmatpush2.msra.mxu0 0.0
    %702 = vmatprep.subr.mxu0 0.0
    %703 = vmatpush2.msra.mxu0 0.0
    %704 = vmatprep.subr.mxu0 0.0
    %705 = vmatpush2.msra.mxu0 0.0
    %706 = vmatprep.subr.mxu0 0.0
    %707 = vmatpush2.msra.mxu0 0.0
    %708 = vmatprep.mubr.f32.mxu0 0.0
    %709 = vmatmul.mubr.f32.gmra.mxu0 %v639
    %v710 = vpop.f32.mrf.mxu0
    %v711 = vadd.f32 0.0, %v710
    %v712 = vpop.f32.mrf.mxu0
    %713 = vmatprep.mubr.f32.mxu0 0.0
    %714 = vmatmul.mubr.f32.gmra.mxu0 %v642
    %v715 = vpop.f32.mrf.mxu0
    %v716 = vadd.f32 0.0, %v715
    %v717 = vpop.f32.mrf.mxu0
    %718 = vdwg.mxu0
    %v719 = vadd.f32 %v544, %v711
    %v720 = vadd.f32 %v549, %v716
    %s721 = scalar_lea.vmem %s3, 48
    %v722 = vld [vmem:[%s721] sm:$0xff]
    %v723 = vld [vmem:[%s721 + $0x8] sm:$0xff]
    %v725 = vsel %vm220, %v722, 0
    %v728 = vsel %vm220, %v723, 0
    %730 = vmatprep.subr.mxu0 0.0
    %731 = vmatpush1.msra.mxu0 0.0
    %732 = vmatprep.subr.mxu0 0.0
    %733 = vmatpush1.msra.mxu0 0.0
    %734 = vmatprep.subr.mxu0 0.0
    %735 = vmatpush1.msra.mxu0 0.0
    %736 = vmatprep.subr.mxu0 0.0
    %737 = vmatpush1.msra.mxu0 0.0
    %738 = vmatprep.subr.mxu0 0.0
    %739 = vmatpush1.msra.mxu0 0.0
    %740 = vmatprep.subr.mxu0 0.0
    %741 = vmatpush1.msra.mxu0 0.0
    %742 = vmatprep.subr.mxu0 0.0
    %743 = vmatpush1.msra.mxu0 0.0
    %744 = vmatprep.subr.mxu0 0.0
    %745 = vmatpush1.msra.mxu0 0.0
    %746 = vmatprep.subr.mxu0 0.0
    %747 = vmatpush1.msra.mxu0 %v217
    %748 = vmatprep.subr.mxu0 0.0
    %749 = vmatpush1.msra.mxu0 %v216
    %750 = vmatprep.subr.mxu0 0.0
    %751 = vmatpush1.msra.mxu0 %v215
    %752 = vmatprep.subr.mxu0 0.0
    %753 = vmatpush1.msra.mxu0 %v214
    %754 = vmatprep.subr.mxu0 0.0
    %755 = vmatpush1.msra.mxu0 %v213
    %756 = vmatprep.subr.mxu0 0.0
    %757 = vmatpush1.msra.mxu0 %v212
    %758 = vmatprep.subr.mxu0 0.0
    %759 = vmatpush1.msra.mxu0 %v211
    %760 = vmatprep.subr.mxu0 0.0
    %761 = vmatpush1.msra.mxu0 %v210
    %762 = vmatprep.subr.mxu0 0.0
    %763 = vmatpush2.msra.mxu0 0.0
    %764 = vmatprep.subr.mxu0 0.0
    %765 = vmatpush2.msra.mxu0 0.0
    %766 = vmatprep.subr.mxu0 0.0
    %767 = vmatpush2.msra.mxu0 0.0
    %768 = vmatprep.subr.mxu0 0.0
    %769 = vmatpush2.msra.mxu0 0.0
    %770 = vmatprep.subr.mxu0 0.0
    %771 = vmatpush2.msra.mxu0 0.0
    %772 = vmatprep.subr.mxu0 0.0
    %773 = vmatpush2.msra.mxu0 0.0
    %774 = vmatprep.subr.mxu0 0.0
    %775 = vmatpush2.msra.mxu0 0.0
    %776 = vmatprep.subr.mxu0 0.0
    %777 = vmatpush2.msra.mxu0 0.0
    %778 = vmatprep.subr.mxu0 0.0
    %779 = vmatpush2.msra.mxu0 0.0
    %780 = vmatprep.subr.mxu0 0.0
    %781 = vmatpush2.msra.mxu0 0.0
    %782 = vmatprep.subr.mxu0 0.0
    %783 = vmatpush2.msra.mxu0 0.0
    %784 = vmatprep.subr.mxu0 0.0
    %785 = vmatpush2.msra.mxu0 0.0
    %786 = vmatprep.subr.mxu0 0.0
    %787 = vmatpush2.msra.mxu0 0.0
    %788 = vmatprep.subr.mxu0 0.0
    %789 = vmatpush2.msra.mxu0 0.0
    %790 = vmatprep.subr.mxu0 0.0
    %791 = vmatpush2.msra.mxu0 0.0
    %792 = vmatprep.subr.mxu0 0.0
    %793 = vmatpush2.msra.mxu0 0.0
    %794 = vmatprep.mubr.f32.mxu0 0.0
    %795 = vmatmul.mubr.f32.gmra.mxu0 %v725
    %v796 = vpop.f32.mrf.mxu0
    %v797 = vadd.f32 0.0, %v796
    %v798 = vpop.f32.mrf.mxu0
    %799 = vmatprep.mubr.f32.mxu0 0.0
    %800 = vmatmul.mubr.f32.gmra.mxu0 %v728
    %v801 = vpop.f32.mrf.mxu0
    %v802 = vadd.f32 0.0, %v801
    %v803 = vpop.f32.mrf.mxu0
    %804 = vdwg.mxu0
    %s805 = scalar_lea.vmem %s4, 24
    %v806 = vld [vmem:[%s805] sm:$0xff]
    %v808 = vsel %vm389, %v797, 0
    %v811 = vsel %vm389, %v802, 0
    %813 = vmatprep.subr.mxu0 0.0
    %814 = vmatpush1.msra.mxu0 0.0
    %815 = vmatprep.subr.mxu0 0.0
    %816 = vmatpush1.msra.mxu0 0.0
    %817 = vmatprep.subr.mxu0 0.0
    %818 = vmatpush1.msra.mxu0 0.0
    %819 = vmatprep.subr.mxu0 0.0
    %820 = vmatpush1.msra.mxu0 0.0
    %821 = vmatprep.subr.mxu0 0.0
    %822 = vmatpush1.msra.mxu0 0.0
    %823 = vmatprep.subr.mxu0 0.0
    %824 = vmatpush1.msra.mxu0 0.0
    %825 = vmatprep.subr.mxu0 0.0
    %826 = vmatpush1.msra.mxu0 0.0
    %827 = vmatprep.subr.mxu0 0.0
    %828 = vmatpush1.msra.mxu0 0.0
    %829 = vmatprep.subr.mxu0 0.0
    %830 = vmatpush1.msra.mxu0 0.0
    %831 = vmatprep.subr.mxu0 0.0
    %832 = vmatpush1.msra.mxu0 0.0
    %833 = vmatprep.subr.mxu0 0.0
    %834 = vmatpush1.msra.mxu0 0.0
    %835 = vmatprep.subr.mxu0 0.0
    %836 = vmatpush1.msra.mxu0 0.0
    %837 = vmatprep.subr.mxu0 0.0
    %838 = vmatpush1.msra.mxu0 0.0
    %839 = vmatprep.subr.mxu0 0.0
    %840 = vmatpush1.msra.mxu0 0.0
    %841 = vmatprep.subr.mxu0 0.0
    %842 = vmatpush1.msra.mxu0 0.0
    %843 = vmatprep.subr.mxu0 0.0
    %844 = vmatpush1.msra.mxu0 %v806
    %845 = vmatprep.subr.mxu0 0.0
    %846 = vmatpush2.msra.mxu0 0.0
    %847 = vmatprep.subr.mxu0 0.0
    %848 = vmatpush2.msra.mxu0 0.0
    %849 = vmatprep.subr.mxu0 0.0
    %850 = vmatpush2.msra.mxu0 0.0
    %851 = vmatprep.subr.mxu0 0.0
    %852 = vmatpush2.msra.mxu0 0.0
    %853 = vmatprep.subr.mxu0 0.0
    %854 = vmatpush2.msra.mxu0 0.0
    %855 = vmatprep.subr.mxu0 0.0
    %856 = vmatpush2.msra.mxu0 0.0
    %857 = vmatprep.subr.mxu0 0.0
    %858 = vmatpush2.msra.mxu0 0.0
    %859 = vmatprep.subr.mxu0 0.0
    %860 = vmatpush2.msra.mxu0 0.0
    %861 = vmatprep.subr.mxu0 0.0
    %862 = vmatpush2.msra.mxu0 0.0
    %863 = vmatprep.subr.mxu0 0.0
    %864 = vmatpush2.msra.mxu0 0.0
    %865 = vmatprep.subr.mxu0 0.0
    %866 = vmatpush2.msra.mxu0 0.0
    %867 = vmatprep.subr.mxu0 0.0
    %868 = vmatpush2.msra.mxu0 0.0
    %869 = vmatprep.subr.mxu0 0.0
    %870 = vmatpush2.msra.mxu0 0.0
    %871 = vmatprep.subr.mxu0 0.0
    %872 = vmatpush2.msra.mxu0 0.0
    %873 = vmatprep.subr.mxu0 0.0
    %874 = vmatpush2.msra.mxu0 0.0
    %875 = vmatprep.subr.mxu0 0.0
    %876 = vmatpush2.msra.mxu0 0.0
    %877 = vmatprep.mubr.f32.mxu0 0.0
    %878 = vmatmul.mubr.f32.gmra.mxu0 %v808
    %v879 = vpop.f32.mrf.mxu0
    %v880 = vadd.f32 0.0, %v879
    %v881 = vpop.f32.mrf.mxu0
    %882 = vmatprep.mubr.f32.mxu0 0.0
    %883 = vmatmul.mubr.f32.gmra.mxu0 %v811
    %v884 = vpop.f32.mrf.mxu0
    %v885 = vadd.f32 0.0, %v884
    %v886 = vpop.f32.mrf.mxu0
    %887 = vdwg.mxu0
    %v888 = vadd.f32 %v719, %v880
    %v889 = vadd.f32 %v720, %v885
    %s890 = scalar_lea.vmem %s3, 64
    %v891 = vld [vmem:[%s890] sm:$0xff]
    %v892 = vld [vmem:[%s890 + $0x8] sm:$0xff]
    %v894 = vsel %vm220, %v891, 0
    %v897 = vsel %vm220, %v892, 0
    %899 = vmatprep.subr.mxu0 0.0
    %900 = vmatpush1.msra.mxu0 0.0
    %901 = vmatprep.subr.mxu0 0.0
    %902 = vmatpush1.msra.mxu0 0.0
    %903 = vmatprep.subr.mxu0 0.0
    %904 = vmatpush1.msra.mxu0 0.0
    %905 = vmatprep.subr.mxu0 0.0
    %906 = vmatpush1.msra.mxu0 0.0
    %907 = vmatprep.subr.mxu0 0.0
    %908 = vmatpush1.msra.mxu0 0.0
    %909 = vmatprep.subr.mxu0 0.0
    %910 = vmatpush1.msra.mxu0 0.0
    %911 = vmatprep.subr.mxu0 0.0
    %912 = vmatpush1.msra.mxu0 0.0
    %913 = vmatprep.subr.mxu0 0.0
    %914 = vmatpush1.msra.mxu0 0.0
    %915 = vmatprep.subr.mxu0 0.0
    %916 = vmatpush1.msra.mxu0 %v217
    %917 = vmatprep.subr.mxu0 0.0
    %918 = vmatpush1.msra.mxu0 %v216
    %919 = vmatprep.subr.mxu0 0.0
    %920 = vmatpush1.msra.mxu0 %v215
    %921 = vmatprep.subr.mxu0 0.0
    %922 = vmatpush1.msra.mxu0 %v214
    %923 = vmatprep.subr.mxu0 0.0
    %924 = vmatpush1.msra.mxu0 %v213
    %925 = vmatprep.subr.mxu0 0.0
    %926 = vmatpush1.msra.mxu0 %v212
    %927 = vmatprep.subr.mxu0 0.0
    %928 = vmatpush1.msra.mxu0 %v211
    %929 = vmatprep.subr.mxu0 0.0
    %930 = vmatpush1.msra.mxu0 %v210
    %931 = vmatprep.subr.mxu0 0.0
    %932 = vmatpush2.msra.mxu0 0.0
    %933 = vmatprep.subr.mxu0 0.0
    %934 = vmatpush2.msra.mxu0 0.0
    %935 = vmatprep.subr.mxu0 0.0
    %936 = vmatpush2.msra.mxu0 0.0
    %937 = vmatprep.subr.mxu0 0.0
    %938 = vmatpush2.msra.mxu0 0.0
    %939 = vmatprep.subr.mxu0 0.0
    %940 = vmatpush2.msra.mxu0 0.0
    %941 = vmatprep.subr.mxu0 0.0
    %942 = vmatpush2.msra.mxu0 0.0
    %943 = vmatprep.subr.mxu0 0.0
    %944 = vmatpush2.msra.mxu0 0.0
    %945 = vmatprep.subr.mxu0 0.0
    %946 = vmatpush2.msra.mxu0 0.0
    %947 = vmatprep.subr.mxu0 0.0
    %948 = vmatpush2.msra.mxu0 0.0
    %949 = vmatprep.subr.mxu0 0.0
    %950 = vmatpush2.msra.mxu0 0.0
    %951 = vmatprep.subr.mxu0 0.0
    %952 = vmatpush2.msra.mxu0 0.0
    %953 = vmatprep.subr.mxu0 0.0
    %954 = vmatpush2.msra.mxu0 0.0
    %955 = vmatprep.subr.mxu0 0.0
    %956 = vmatpush2.msra.mxu0 0.0
    %957 = vmatprep.subr.mxu0 0.0
    %958 = vmatpush2.msra.mxu0 0.0
    %959 = vmatprep.subr.mxu0 0.0
    %960 = vmatpush2.msra.mxu0 0.0
    %961 = vmatprep.subr.mxu0 0.0
    %962 = vmatpush2.msra.mxu0 0.0
    %963 = vmatprep.mubr.f32.mxu0 0.0
    %964 = vmatmul.mubr.f32.gmra.mxu0 %v894
    %v965 = vpop.f32.mrf.mxu0
    %v966 = vadd.f32 0.0, %v965
    %v967 = vpop.f32.mrf.mxu0
    %968 = vmatprep.mubr.f32.mxu0 0.0
    %969 = vmatmul.mubr.f32.gmra.mxu0 %v897
    %v970 = vpop.f32.mrf.mxu0
    %v971 = vadd.f32 0.0, %v970
    %v972 = vpop.f32.mrf.mxu0
    %973 = vdwg.mxu0
    %s974 = scalar_lea.vmem %s4, 32
    %v975 = vld [vmem:[%s974] sm:$0xff]
    %v977 = vsel %vm389, %v966, 0
    %v980 = vsel %vm389, %v971, 0
    %982 = vmatprep.subr.mxu0 0.0
    %983 = vmatpush1.msra.mxu0 0.0
    %984 = vmatprep.subr.mxu0 0.0
    %985 = vmatpush1.msra.mxu0 0.0
    %986 = vmatprep.subr.mxu0 0.0
    %987 = vmatpush1.msra.mxu0 0.0
    %988 = vmatprep.subr.mxu0 0.0
    %989 = vmatpush1.msra.mxu0 0.0
    %990 = vmatprep.subr.mxu0 0.0
    %991 = vmatpush1.msra.mxu0 0.0
    %992 = vmatprep.subr.mxu0 0.0
    %993 = vmatpush1.msra.mxu0 0.0
    %994 = vmatprep.subr.mxu0 0.0
    %995 = vmatpush1.msra.mxu0 0.0
    %996 = vmatprep.subr.mxu0 0.0
    %997 = vmatpush1.msra.mxu0 0.0
    %998 = vmatprep.subr.mxu0 0.0
    %999 = vmatpush1.msra.mxu0 0.0
    %1000 = vmatprep.subr.mxu0 0.0
    %1001 = vmatpush1.msra.mxu0 0.0
    %1002 = vmatprep.subr.mxu0 0.0
    %1003 = vmatpush1.msra.mxu0 0.0
    %1004 = vmatprep.subr.mxu0 0.0
    %1005 = vmatpush1.msra.mxu0 0.0
    %1006 = vmatprep.subr.mxu0 0.0
    %1007 = vmatpush1.msra.mxu0 0.0
    %1008 = vmatprep.subr.mxu0 0.0
    %1009 = vmatpush1.msra.mxu0 0.0
    %1010 = vmatprep.subr.mxu0 0.0
    %1011 = vmatpush1.msra.mxu0 0.0
    %1012 = vmatprep.subr.mxu0 0.0
    %1013 = vmatpush1.msra.mxu0 %v975
    %1014 = vmatprep.subr.mxu0 0.0
    %1015 = vmatpush2.msra.mxu0 0.0
    %1016 = vmatprep.subr.mxu0 0.0
    %1017 = vmatpush2.msra.mxu0 0.0
    %1018 = vmatprep.subr.mxu0 0.0
    %1019 = vmatpush2.msra.mxu0 0.0
    %1020 = vmatprep.subr.mxu0 0.0
    %1021 = vmatpush2.msra.mxu0 0.0
    %1022 = vmatprep.subr.mxu0 0.0
    %1023 = vmatpush2.msra.mxu0 0.0
    %1024 = vmatprep.subr.mxu0 0.0
    %1025 = vmatpush2.msra.mxu0 0.0
    %1026 = vmatprep.subr.mxu0 0.0
    %1027 = vmatpush2.msra.mxu0 0.0
    %1028 = vmatprep.subr.mxu0 0.0
    %1029 = vmatpush2.msra.mxu0 0.0
    %1030 = vmatprep.subr.mxu0 0.0
    %1031 = vmatpush2.msra.mxu0 0.0
    %1032 = vmatprep.subr.mxu0 0.0
    %1033 = vmatpush2.msra.mxu0 0.0
    %1034 = vmatprep.subr.mxu0 0.0
    %1035 = vmatpush2.msra.mxu0 0.0
    %1036 = vmatprep.subr.mxu0 0.0
    %1037 = vmatpush2.msra.mxu0 0.0
    %1038 = vmatprep.subr.mxu0 0.0
    %1039 = vmatpush2.msra.mxu0 0.0
    %1040 = vmatprep.subr.mxu0 0.0
    %1041 = vmatpush2.msra.mxu0 0.0
    %1042 = vmatprep.subr.mxu0 0.0
    %1043 = vmatpush2.msra.mxu0 0.0
    %1044 = vmatprep.subr.mxu0 0.0
    %1045 = vmatpush2.msra.mxu0 0.0
    %1046 = vmatprep.mubr.f32.mxu0 0.0
    %1047 = vmatmul.mubr.f32.gmra.mxu0 %v977
    %v1048 = vpop.f32.mrf.mxu0
    %v1049 = vadd.f32 0.0, %v1048
    %v1050 = vpop.f32.mrf.mxu0
    %1051 = vmatprep.mubr.f32.mxu0 0.0
    %1052 = vmatmul.mubr.f32.gmra.mxu0 %v980
    %v1053 = vpop.f32.mrf.mxu0
    %v1054 = vadd.f32 0.0, %v1053
    %v1055 = vpop.f32.mrf.mxu0
    %1056 = vdwg.mxu0
    %v1057 = vadd.f32 %v888, %v1049
    %v1058 = vadd.f32 %v889, %v1054
    %s1059 = scalar_lea.vmem %s3, 80
    %v1060 = vld [vmem:[%s1059] sm:$0xff]
    %v1061 = vld [vmem:[%s1059 + $0x8] sm:$0xff]
    %v1063 = vsel %vm220, %v1060, 0
    %v1066 = vsel %vm220, %v1061, 0
    %1068 = vmatprep.subr.mxu0 0.0
    %1069 = vmatpush1.msra.mxu0 0.0
    %1070 = vmatprep.subr.mxu0 0.0
    %1071 = vmatpush1.msra.mxu0 0.0
    %1072 = vmatprep.subr.mxu0 0.0
    %1073 = vmatpush1.msra.mxu0 0.0
    %1074 = vmatprep.subr.mxu0 0.0
    %1075 = vmatpush1.msra.mxu0 0.0
    %1076 = vmatprep.subr.mxu0 0.0
    %1077 = vmatpush1.msra.mxu0 0.0
    %1078 = vmatprep.subr.mxu0 0.0
    %1079 = vmatpush1.msra.mxu0 0.0
    %1080 = vmatprep.subr.mxu0 0.0
    %1081 = vmatpush1.msra.mxu0 0.0
    %1082 = vmatprep.subr.mxu0 0.0
    %1083 = vmatpush1.msra.mxu0 0.0
    %1084 = vmatprep.subr.mxu0 0.0
    %1085 = vmatpush1.msra.mxu0 %v217
    %1086 = vmatprep.subr.mxu0 0.0
    %1087 = vmatpush1.msra.mxu0 %v216
    %1088 = vmatprep.subr.mxu0 0.0
    %1089 = vmatpush1.msra.mxu0 %v215
    %1090 = vmatprep.subr.mxu0 0.0
    %1091 = vmatpush1.msra.mxu0 %v214
    %1092 = vmatprep.subr.mxu0 0.0
    %1093 = vmatpush1.msra.mxu0 %v213
    %1094 = vmatprep.subr.mxu0 0.0
    %1095 = vmatpush1.msra.mxu0 %v212
    %1096 = vmatprep.subr.mxu0 0.0
    %1097 = vmatpush1.msra.mxu0 %v211
    %1098 = vmatprep.subr.mxu0 0.0
    %1099 = vmatpush1.msra.mxu0 %v210
    %1100 = vmatprep.subr.mxu0 0.0
    %1101 = vmatpush2.msra.mxu0 0.0
    %1102 = vmatprep.subr.mxu0 0.0
    %1103 = vmatpush2.msra.mxu0 0.0
    %1104 = vmatprep.subr.mxu0 0.0
    %1105 = vmatpush2.msra.mxu0 0.0
    %1106 = vmatprep.subr.mxu0 0.0
    %1107 = vmatpush2.msra.mxu0 0.0
    %1108 = vmatprep.subr.mxu0 0.0
    %1109 = vmatpush2.msra.mxu0 0.0
    %1110 = vmatprep.subr.mxu0 0.0
    %1111 = vmatpush2.msra.mxu0 0.0
    %1112 = vmatprep.subr.mxu0 0.0
    %1113 = vmatpush2.msra.mxu0 0.0
    %1114 = vmatprep.subr.mxu0 0.0
    %1115 = vmatpush2.msra.mxu0 0.0
    %1116 = vmatprep.subr.mxu0 0.0
    %1117 = vmatpush2.msra.mxu0 0.0
    %1118 = vmatprep.subr.mxu0 0.0
    %1119 = vmatpush2.msra.mxu0 0.0
    %1120 = vmatprep.subr.mxu0 0.0
    %1121 = vmatpush2.msra.mxu0 0.0
    %1122 = vmatprep.subr.mxu0 0.0
    %1123 = vmatpush2.msra.mxu0 0.0
    %1124 = vmatprep.subr.mxu0 0.0
    %1125 = vmatpush2.msra.mxu0 0.0
    %1126 = vmatprep.subr.mxu0 0.0
    %1127 = vmatpush2.msra.mxu0 0.0
    %1128 = vmatprep.subr.mxu0 0.0
    %1129 = vmatpush2.msra.mxu0 0.0
    %1130 = vmatprep.subr.mxu0 0.0
    %1131 = vmatpush2.msra.mxu0 0.0
    %1132 = vmatprep.mubr.f32.mxu0 0.0
    %1133 = vmatmul.mubr.f32.gmra.mxu0 %v1063
    %v1134 = vpop.f32.mrf.mxu0
    %v1135 = vadd.f32 0.0, %v1134
    %v1136 = vpop.f32.mrf.mxu0
    %1137 = vmatprep.mubr.f32.mxu0 0.0
    %1138 = vmatmul.mubr.f32.gmra.mxu0 %v1066
    %v1139 = vpop.f32.mrf.mxu0
    %v1140 = vadd.f32 0.0, %v1139
    %v1141 = vpop.f32.mrf.mxu0
    %1142 = vdwg.mxu0
    %s1143 = scalar_lea.vmem %s4, 40
    %v1144 = vld [vmem:[%s1143] sm:$0xff]
    %v1146 = vsel %vm389, %v1135, 0
    %v1149 = vsel %vm389, %v1140, 0
    %1151 = vmatprep.subr.mxu0 0.0
    %1152 = vmatpush1.msra.mxu0 0.0
    %1153 = vmatprep.subr.mxu0 0.0
    %1154 = vmatpush1.msra.mxu0 0.0
    %1155 = vmatprep.subr.mxu0 0.0
    %1156 = vmatpush1.msra.mxu0 0.0
    %1157 = vmatprep.subr.mxu0 0.0
    %1158 = vmatpush1.msra.mxu0 0.0
    %1159 = vmatprep.subr.mxu0 0.0
    %1160 = vmatpush1.msra.mxu0 0.0
    %1161 = vmatprep.subr.mxu0 0.0
    %1162 = vmatpush1.msra.mxu0 0.0
    %1163 = vmatprep.subr.mxu0 0.0
    %1164 = vmatpush1.msra.mxu0 0.0
    %1165 = vmatprep.subr.mxu0 0.0
    %1166 = vmatpush1.msra.mxu0 0.0
    %1167 = vmatprep.subr.mxu0 0.0
    %1168 = vmatpush1.msra.mxu0 0.0
    %1169 = vmatprep.subr.mxu0 0.0
    %1170 = vmatpush1.msra.mxu0 0.0
    %1171 = vmatprep.subr.mxu0 0.0
    %1172 = vmatpush1.msra.mxu0 0.0
    %1173 = vmatprep.subr.mxu0 0.0
    %1174 = vmatpush1.msra.mxu0 0.0
    %1175 = vmatprep.subr.mxu0 0.0
    %1176 = vmatpush1.msra.mxu0 0.0
    %1177 = vmatprep.subr.mxu0 0.0
    %1178 = vmatpush1.msra.mxu0 0.0
    %1179 = vmatprep.subr.mxu0 0.0
    %1180 = vmatpush1.msra.mxu0 0.0
    %1181 = vmatprep.subr.mxu0 0.0
    %1182 = vmatpush1.msra.mxu0 %v1144
    %1183 = vmatprep.subr.mxu0 0.0
    %1184 = vmatpush2.msra.mxu0 0.0
    %1185 = vmatprep.subr.mxu0 0.0
    %1186 = vmatpush2.msra.mxu0 0.0
    %1187 = vmatprep.subr.mxu0 0.0
    %1188 = vmatpush2.msra.mxu0 0.0
    %1189 = vmatprep.subr.mxu0 0.0
    %1190 = vmatpush2.msra.mxu0 0.0
    %1191 = vmatprep.subr.mxu0 0.0
    %1192 = vmatpush2.msra.mxu0 0.0
    %1193 = vmatprep.subr.mxu0 0.0
    %1194 = vmatpush2.msra.mxu0 0.0
    %1195 = vmatprep.subr.mxu0 0.0
    %1196 = vmatpush2.msra.mxu0 0.0
    %1197 = vmatprep.subr.mxu0 0.0
    %1198 = vmatpush2.msra.mxu0 0.0
    %1199 = vmatprep.subr.mxu0 0.0
    %1200 = vmatpush2.msra.mxu0 0.0
    %1201 = vmatprep.subr.mxu0 0.0
    %1202 = vmatpush2.msra.mxu0 0.0
    %1203 = vmatprep.subr.mxu0 0.0
    %1204 = vmatpush2.msra.mxu0 0.0
    %1205 = vmatprep.subr.mxu0 0.0
    %1206 = vmatpush2.msra.mxu0 0.0
    %1207 = vmatprep.subr.mxu0 0.0
    %1208 = vmatpush2.msra.mxu0 0.0
    %1209 = vmatprep.subr.mxu0 0.0
    %1210 = vmatpush2.msra.mxu0 0.0
    %1211 = vmatprep.subr.mxu0 0.0
    %1212 = vmatpush2.msra.mxu0 0.0
    %1213 = vmatprep.subr.mxu0 0.0
    %1214 = vmatpush2.msra.mxu0 0.0
    %1215 = vmatprep.mubr.f32.mxu0 0.0
    %1216 = vmatmul.mubr.f32.gmra.mxu0 %v1146
    %v1217 = vpop.f32.mrf.mxu0
    %v1218 = vadd.f32 0.0, %v1217
    %v1219 = vpop.f32.mrf.mxu0
    %1220 = vmatprep.mubr.f32.mxu0 0.0
    %1221 = vmatmul.mubr.f32.gmra.mxu0 %v1149
    %v1222 = vpop.f32.mrf.mxu0
    %v1223 = vadd.f32 0.0, %v1222
    %v1224 = vpop.f32.mrf.mxu0
    %1225 = vdwg.mxu0
    %v1226 = vadd.f32 %v1057, %v1218
    %v1227 = vadd.f32 %v1058, %v1223
    %s1228 = scalar_lea.vmem %s3, 96
    %v1229 = vld [vmem:[%s1228] sm:$0xff]
    %v1230 = vld [vmem:[%s1228 + $0x8] sm:$0xff]
    %v1232 = vsel %vm220, %v1229, 0
    %v1235 = vsel %vm220, %v1230, 0
    %1237 = vmatprep.subr.mxu0 0.0
    %1238 = vmatpush1.msra.mxu0 0.0
    %1239 = vmatprep.subr.mxu0 0.0
    %1240 = vmatpush1.msra.mxu0 0.0
    %1241 = vmatprep.subr.mxu0 0.0
    %1242 = vmatpush1.msra.mxu0 0.0
    %1243 = vmatprep.subr.mxu0 0.0
    %1244 = vmatpush1.msra.mxu0 0.0
    %1245 = vmatprep.subr.mxu0 0.0
    %1246 = vmatpush1.msra.mxu0 0.0
    %1247 = vmatprep.subr.mxu0 0.0
    %1248 = vmatpush1.msra.mxu0 0.0
    %1249 = vmatprep.subr.mxu0 0.0
    %1250 = vmatpush1.msra.mxu0 0.0
    %1251 = vmatprep.subr.mxu0 0.0
    %1252 = vmatpush1.msra.mxu0 0.0
    %1253 = vmatprep.subr.mxu0 0.0
    %1254 = vmatpush1.msra.mxu0 %v217
    %1255 = vmatprep.subr.mxu0 0.0
    %1256 = vmatpush1.msra.mxu0 %v216
    %1257 = vmatprep.subr.mxu0 0.0
    %1258 = vmatpush1.msra.mxu0 %v215
    %1259 = vmatprep.subr.mxu0 0.0
    %1260 = vmatpush1.msra.mxu0 %v214
    %1261 = vmatprep.subr.mxu0 0.0
    %1262 = vmatpush1.msra.mxu0 %v213
    %1263 = vmatprep.subr.mxu0 0.0
    %1264 = vmatpush1.msra.mxu0 %v212
    %1265 = vmatprep.subr.mxu0 0.0
    %1266 = vmatpush1.msra.mxu0 %v211
    %1267 = vmatprep.subr.mxu0 0.0
    %1268 = vmatpush1.msra.mxu0 %v210
    %1269 = vmatprep.subr.mxu0 0.0
    %1270 = vmatpush2.msra.mxu0 0.0
    %1271 = vmatprep.subr.mxu0 0.0
    %1272 = vmatpush2.msra.mxu0 0.0
    %1273 = vmatprep.subr.mxu0 0.0
    %1274 = vmatpush2.msra.mxu0 0.0
    %1275 = vmatprep.subr.mxu0 0.0
    %1276 = vmatpush2.msra.mxu0 0.0
    %1277 = vmatprep.subr.mxu0 0.0
    %1278 = vmatpush2.msra.mxu0 0.0
    %1279 = vmatprep.subr.mxu0 0.0
    %1280 = vmatpush2.msra.mxu0 0.0
    %1281 = vmatprep.subr.mxu0 0.0
    %1282 = vmatpush2.msra.mxu0 0.0
    %1283 = vmatprep.subr.mxu0 0.0
    %1284 = vmatpush2.msra.mxu0 0.0
    %1285 = vmatprep.subr.mxu0 0.0
    %1286 = vmatpush2.msra.mxu0 0.0
    %1287 = vmatprep.subr.mxu0 0.0
    %1288 = vmatpush2.msra.mxu0 0.0
    %1289 = vmatprep.subr.mxu0 0.0
    %1290 = vmatpush2.msra.mxu0 0.0
    %1291 = vmatprep.subr.mxu0 0.0
    %1292 = vmatpush2.msra.mxu0 0.0
    %1293 = vmatprep.subr.mxu0 0.0
    %1294 = vmatpush2.msra.mxu0 0.0
    %1295 = vmatprep.subr.mxu0 0.0
    %1296 = vmatpush2.msra.mxu0 0.0
    %1297 = vmatprep.subr.mxu0 0.0
    %1298 = vmatpush2.msra.mxu0 0.0
    %1299 = vmatprep.subr.mxu0 0.0
    %1300 = vmatpush2.msra.mxu0 0.0
    %1301 = vmatprep.mubr.f32.mxu0 0.0
    %1302 = vmatmul.mubr.f32.gmra.mxu0 %v1232
    %v1303 = vpop.f32.mrf.mxu0
    %v1304 = vadd.f32 0.0, %v1303
    %v1305 = vpop.f32.mrf.mxu0
    %1306 = vmatprep.mubr.f32.mxu0 0.0
    %1307 = vmatmul.mubr.f32.gmra.mxu0 %v1235
    %v1308 = vpop.f32.mrf.mxu0
    %v1309 = vadd.f32 0.0, %v1308
    %v1310 = vpop.f32.mrf.mxu0
    %1311 = vdwg.mxu0
    %s1312 = scalar_lea.vmem %s4, 48
    %v1313 = vld [vmem:[%s1312] sm:$0xff]
    %v1315 = vsel %vm389, %v1304, 0
    %v1318 = vsel %vm389, %v1309, 0
    %1320 = vmatprep.subr.mxu0 0.0
    %1321 = vmatpush1.msra.mxu0 0.0
    %1322 = vmatprep.subr.mxu0 0.0
    %1323 = vmatpush1.msra.mxu0 0.0
    %1324 = vmatprep.subr.mxu0 0.0
    %1325 = vmatpush1.msra.mxu0 0.0
    %1326 = vmatprep.subr.mxu0 0.0
    %1327 = vmatpush1.msra.mxu0 0.0
    %1328 = vmatprep.subr.mxu0 0.0
    %1329 = vmatpush1.msra.mxu0 0.0
    %1330 = vmatprep.subr.mxu0 0.0
    %1331 = vmatpush1.msra.mxu0 0.0
    %1332 = vmatprep.subr.mxu0 0.0
    %1333 = vmatpush1.msra.mxu0 0.0
    %1334 = vmatprep.subr.mxu0 0.0
    %1335 = vmatpush1.msra.mxu0 0.0
    %1336 = vmatprep.subr.mxu0 0.0
    %1337 = vmatpush1.msra.mxu0 0.0
    %1338 = vmatprep.subr.mxu0 0.0
    %1339 = vmatpush1.msra.mxu0 0.0
    %1340 = vmatprep.subr.mxu0 0.0
    %1341 = vmatpush1.msra.mxu0 0.0
    %1342 = vmatprep.subr.mxu0 0.0
    %1343 = vmatpush1.msra.mxu0 0.0
    %1344 = vmatprep.subr.mxu0 0.0
    %1345 = vmatpush1.msra.mxu0 0.0
    %1346 = vmatprep.subr.mxu0 0.0
    %1347 = vmatpush1.msra.mxu0 0.0
    %1348 = vmatprep.subr.mxu0 0.0
    %1349 = vmatpush1.msra.mxu0 0.0
    %1350 = vmatprep.subr.mxu0 0.0
    %1351 = vmatpush1.msra.mxu0 %v1313
    %1352 = vmatprep.subr.mxu0 0.0
    %1353 = vmatpush2.msra.mxu0 0.0
    %1354 = vmatprep.subr.mxu0 0.0
    %1355 = vmatpush2.msra.mxu0 0.0
    %1356 = vmatprep.subr.mxu0 0.0
    %1357 = vmatpush2.msra.mxu0 0.0
    %1358 = vmatprep.subr.mxu0 0.0
    %1359 = vmatpush2.msra.mxu0 0.0
    %1360 = vmatprep.subr.mxu0 0.0
    %1361 = vmatpush2.msra.mxu0 0.0
    %1362 = vmatprep.subr.mxu0 0.0
    %1363 = vmatpush2.msra.mxu0 0.0
    %1364 = vmatprep.subr.mxu0 0.0
    %1365 = vmatpush2.msra.mxu0 0.0
    %1366 = vmatprep.subr.mxu0 0.0
    %1367 = vmatpush2.msra.mxu0 0.0
    %1368 = vmatprep.subr.mxu0 0.0
    %1369 = vmatpush2.msra.mxu0 0.0
    %1370 = vmatprep.subr.mxu0 0.0
    %1371 = vmatpush2.msra.mxu0 0.0
    %1372 = vmatprep.subr.mxu0 0.0
    %1373 = vmatpush2.msra.mxu0 0.0
    %1374 = vmatprep.subr.mxu0 0.0
    %1375 = vmatpush2.msra.mxu0 0.0
    %1376 = vmatprep.subr.mxu0 0.0
    %1377 = vmatpush2.msra.mxu0 0.0
    %1378 = vmatprep.subr.mxu0 0.0
    %1379 = vmatpush2.msra.mxu0 0.0
    %1380 = vmatprep.subr.mxu0 0.0
    %1381 = vmatpush2.msra.mxu0 0.0
    %1382 = vmatprep.subr.mxu0 0.0
    %1383 = vmatpush2.msra.mxu0 0.0
    %1384 = vmatprep.mubr.f32.mxu0 0.0
    %1385 = vmatmul.mubr.f32.gmra.mxu0 %v1315
    %v1386 = vpop.f32.mrf.mxu0
    %v1387 = vadd.f32 0.0, %v1386
    %v1388 = vpop.f32.mrf.mxu0
    %1389 = vmatprep.mubr.f32.mxu0 0.0
    %1390 = vmatmul.mubr.f32.gmra.mxu0 %v1318
    %v1391 = vpop.f32.mrf.mxu0
    %v1392 = vadd.f32 0.0, %v1391
    %v1393 = vpop.f32.mrf.mxu0
    %1394 = vdwg.mxu0
    %v1395 = vadd.f32 %v1226, %v1387
    %v1396 = vadd.f32 %v1227, %v1392
    %s1397 = scalar_lea.vmem %s3, 112
    %v1398 = vld [vmem:[%s1397] sm:$0xff]
    %v1399 = vld [vmem:[%s1397 + $0x8] sm:$0xff]
    %v1401 = vsel %vm220, %v1398, 0
    %v1404 = vsel %vm220, %v1399, 0
    %1406 = vmatprep.subr.mxu0 0.0
    %1407 = vmatpush1.msra.mxu0 0.0
    %1408 = vmatprep.subr.mxu0 0.0
    %1409 = vmatpush1.msra.mxu0 0.0
    %1410 = vmatprep.subr.mxu0 0.0
    %1411 = vmatpush1.msra.mxu0 0.0
    %1412 = vmatprep.subr.mxu0 0.0
    %1413 = vmatpush1.msra.mxu0 0.0
    %1414 = vmatprep.subr.mxu0 0.0
    %1415 = vmatpush1.msra.mxu0 0.0
    %1416 = vmatprep.subr.mxu0 0.0
    %1417 = vmatpush1.msra.mxu0 0.0
    %1418 = vmatprep.subr.mxu0 0.0
    %1419 = vmatpush1.msra.mxu0 0.0
    %1420 = vmatprep.subr.mxu0 0.0
    %1421 = vmatpush1.msra.mxu0 0.0
    %1422 = vmatprep.subr.mxu0 0.0
    %1423 = vmatpush1.msra.mxu0 %v217
    %1424 = vmatprep.subr.mxu0 0.0
    %1425 = vmatpush1.msra.mxu0 %v216
    %1426 = vmatprep.subr.mxu0 0.0
    %1427 = vmatpush1.msra.mxu0 %v215
    %1428 = vmatprep.subr.mxu0 0.0
    %1429 = vmatpush1.msra.mxu0 %v214
    %1430 = vmatprep.subr.mxu0 0.0
    %1431 = vmatpush1.msra.mxu0 %v213
    %1432 = vmatprep.subr.mxu0 0.0
    %1433 = vmatpush1.msra.mxu0 %v212
    %1434 = vmatprep.subr.mxu0 0.0
    %1435 = vmatpush1.msra.mxu0 %v211
    %1436 = vmatprep.subr.mxu0 0.0
    %1437 = vmatpush1.msra.mxu0 %v210
    %1438 = vmatprep.subr.mxu0 0.0
    %1439 = vmatpush2.msra.mxu0 0.0
    %1440 = vmatprep.subr.mxu0 0.0
    %1441 = vmatpush2.msra.mxu0 0.0
    %1442 = vmatprep.subr.mxu0 0.0
    %1443 = vmatpush2.msra.mxu0 0.0
    %1444 = vmatprep.subr.mxu0 0.0
    %1445 = vmatpush2.msra.mxu0 0.0
    %1446 = vmatprep.subr.mxu0 0.0
    %1447 = vmatpush2.msra.mxu0 0.0
    %1448 = vmatprep.subr.mxu0 0.0
    %1449 = vmatpush2.msra.mxu0 0.0
    %1450 = vmatprep.subr.mxu0 0.0
    %1451 = vmatpush2.msra.mxu0 0.0
    %1452 = vmatprep.subr.mxu0 0.0
    %1453 = vmatpush2.msra.mxu0 0.0
    %1454 = vmatprep.subr.mxu0 0.0
    %1455 = vmatpush2.msra.mxu0 0.0
    %1456 = vmatprep.subr.mxu0 0.0
    %1457 = vmatpush2.msra.mxu0 0.0
    %1458 = vmatprep.subr.mxu0 0.0
    %1459 = vmatpush2.msra.mxu0 0.0
    %1460 = vmatprep.subr.mxu0 0.0
    %1461 = vmatpush2.msra.mxu0 0.0
    %1462 = vmatprep.subr.mxu0 0.0
    %1463 = vmatpush2.msra.mxu0 0.0
    %1464 = vmatprep.subr.mxu0 0.0
    %1465 = vmatpush2.msra.mxu0 0.0
    %1466 = vmatprep.subr.mxu0 0.0
    %1467 = vmatpush2.msra.mxu0 0.0
    %1468 = vmatprep.subr.mxu0 0.0
    %1469 = vmatpush2.msra.mxu0 0.0
    %1470 = vmatprep.mubr.f32.mxu0 0.0
    %1471 = vmatmul.mubr.f32.gmra.mxu0 %v1401
    %v1472 = vpop.f32.mrf.mxu0
    %v1473 = vadd.f32 0.0, %v1472
    %v1474 = vpop.f32.mrf.mxu0
    %1475 = vmatprep.mubr.f32.mxu0 0.0
    %1476 = vmatmul.mubr.f32.gmra.mxu0 %v1404
    %v1477 = vpop.f32.mrf.mxu0
    %v1478 = vadd.f32 0.0, %v1477
    %v1479 = vpop.f32.mrf.mxu0
    %1480 = vdwg.mxu0
    %s1481 = scalar_lea.vmem %s4, 56
    %v1482 = vld [vmem:[%s1481] sm:$0xff]
    %v1484 = vsel %vm389, %v1473, 0
    %v1487 = vsel %vm389, %v1478, 0
    %1489 = vmatprep.subr.mxu0 0.0
    %1490 = vmatpush1.msra.mxu0 0.0
    %1491 = vmatprep.subr.mxu0 0.0
    %1492 = vmatpush1.msra.mxu0 0.0
    %1493 = vmatprep.subr.mxu0 0.0
    %1494 = vmatpush1.msra.mxu0 0.0
    %1495 = vmatprep.subr.mxu0 0.0
    %1496 = vmatpush1.msra.mxu0 0.0
    %1497 = vmatprep.subr.mxu0 0.0
    %1498 = vmatpush1.msra.mxu0 0.0
    %1499 = vmatprep.subr.mxu0 0.0
    %1500 = vmatpush1.msra.mxu0 0.0
    %1501 = vmatprep.subr.mxu0 0.0
    %1502 = vmatpush1.msra.mxu0 0.0
    %1503 = vmatprep.subr.mxu0 0.0
    %1504 = vmatpush1.msra.mxu0 0.0
    %1505 = vmatprep.subr.mxu0 0.0
    %1506 = vmatpush1.msra.mxu0 0.0
    %1507 = vmatprep.subr.mxu0 0.0
    %1508 = vmatpush1.msra.mxu0 0.0
    %1509 = vmatprep.subr.mxu0 0.0
    %1510 = vmatpush1.msra.mxu0 0.0
    %1511 = vmatprep.subr.mxu0 0.0
    %1512 = vmatpush1.msra.mxu0 0.0
    %1513 = vmatprep.subr.mxu0 0.0
    %1514 = vmatpush1.msra.mxu0 0.0
    %1515 = vmatprep.subr.mxu0 0.0
    %1516 = vmatpush1.msra.mxu0 0.0
    %1517 = vmatprep.subr.mxu0 0.0
    %1518 = vmatpush1.msra.mxu0 0.0
    %1519 = vmatprep.subr.mxu0 0.0
    %1520 = vmatpush1.msra.mxu0 %v1482
    %1521 = vmatprep.subr.mxu0 0.0
    %1522 = vmatpush2.msra.mxu0 0.0
    %1523 = vmatprep.subr.mxu0 0.0
    %1524 = vmatpush2.msra.mxu0 0.0
    %1525 = vmatprep.subr.mxu0 0.0
    %1526 = vmatpush2.msra.mxu0 0.0
    %1527 = vmatprep.subr.mxu0 0.0
    %1528 = vmatpush2.msra.mxu0 0.0
    %1529 = vmatprep.subr.mxu0 0.0
    %1530 = vmatpush2.msra.mxu0 0.0
    %1531 = vmatprep.subr.mxu0 0.0
    %1532 = vmatpush2.msra.mxu0 0.0
    %1533 = vmatprep.subr.mxu0 0.0
    %1534 = vmatpush2.msra.mxu0 0.0
    %1535 = vmatprep.subr.mxu0 0.0
    %1536 = vmatpush2.msra.mxu0 0.0
    %1537 = vmatprep.subr.mxu0 0.0
    %1538 = vmatpush2.msra.mxu0 0.0
    %1539 = vmatprep.subr.mxu0 0.0
    %1540 = vmatpush2.msra.mxu0 0.0
    %1541 = vmatprep.subr.mxu0 0.0
    %1542 = vmatpush2.msra.mxu0 0.0
    %1543 = vmatprep.subr.mxu0 0.0
    %1544 = vmatpush2.msra.mxu0 0.0
    %1545 = vmatprep.subr.mxu0 0.0
    %1546 = vmatpush2.msra.mxu0 0.0
    %1547 = vmatprep.subr.mxu0 0.0
    %1548 = vmatpush2.msra.mxu0 0.0
    %1549 = vmatprep.subr.mxu0 0.0
    %1550 = vmatpush2.msra.mxu0 0.0
    %1551 = vmatprep.subr.mxu0 0.0
    %1552 = vmatpush2.msra.mxu0 0.0
    %1553 = vmatprep.mubr.f32.mxu0 0.0
    %1554 = vmatmul.mubr.f32.gmra.mxu0 %v1484
    %v1555 = vpop.f32.mrf.mxu0
    %v1556 = vadd.f32 0.0, %v1555
    %v1557 = vpop.f32.mrf.mxu0
    %1558 = vmatprep.mubr.f32.mxu0 0.0
    %1559 = vmatmul.mubr.f32.gmra.mxu0 %v1487
    %v1560 = vpop.f32.mrf.mxu0
    %v1561 = vadd.f32 0.0, %v1560
    %v1562 = vpop.f32.mrf.mxu0
    %1563 = vdwg.mxu0
    %v1564 = vadd.f32 %v1395, %v1556
    %v1565 = vadd.f32 %v1396, %v1561
    %s1566 = scalar_lea.vmem %s3, 128
    %v1567 = vld [vmem:[%s1566] sm:$0xff]
    %v1568 = vld [vmem:[%s1566 + $0x8] sm:$0xff]
    %v1570 = vsel %vm220, %v1567, 0
    %v1573 = vsel %vm220, %v1568, 0
    %1575 = vmatprep.subr.mxu0 0.0
    %1576 = vmatpush1.msra.mxu0 0.0
    %1577 = vmatprep.subr.mxu0 0.0
    %1578 = vmatpush1.msra.mxu0 0.0
    %1579 = vmatprep.subr.mxu0 0.0
    %1580 = vmatpush1.msra.mxu0 0.0
    %1581 = vmatprep.subr.mxu0 0.0
    %1582 = vmatpush1.msra.mxu0 0.0
    %1583 = vmatprep.subr.mxu0 0.0
    %1584 = vmatpush1.msra.mxu0 0.0
    %1585 = vmatprep.subr.mxu0 0.0
    %1586 = vmatpush1.msra.mxu0 0.0
    %1587 = vmatprep.subr.mxu0 0.0
    %1588 = vmatpush1.msra.mxu0 0.0
    %1589 = vmatprep.subr.mxu0 0.0
    %1590 = vmatpush1.msra.mxu0 0.0
    %1591 = vmatprep.subr.mxu0 0.0
    %1592 = vmatpush1.msra.mxu0 %v217
    %1593 = vmatprep.subr.mxu0 0.0
    %1594 = vmatpush1.msra.mxu0 %v216
    %1595 = vmatprep.subr.mxu0 0.0
    %1596 = vmatpush1.msra.mxu0 %v215
    %1597 = vmatprep.subr.mxu0 0.0
    %1598 = vmatpush1.msra.mxu0 %v214
    %1599 = vmatprep.subr.mxu0 0.0
    %1600 = vmatpush1.msra.mxu0 %v213
    %1601 = vmatprep.subr.mxu0 0.0
    %1602 = vmatpush1.msra.mxu0 %v212
    %1603 = vmatprep.subr.mxu0 0.0
    %1604 = vmatpush1.msra.mxu0 %v211
    %1605 = vmatprep.subr.mxu0 0.0
    %1606 = vmatpush1.msra.mxu0 %v210
    %1607 = vmatprep.subr.mxu0 0.0
    %1608 = vmatpush2.msra.mxu0 0.0
    %1609 = vmatprep.subr.mxu0 0.0
    %1610 = vmatpush2.msra.mxu0 0.0
    %1611 = vmatprep.subr.mxu0 0.0
    %1612 = vmatpush2.msra.mxu0 0.0
    %1613 = vmatprep.subr.mxu0 0.0
    %1614 = vmatpush2.msra.mxu0 0.0
    %1615 = vmatprep.subr.mxu0 0.0
    %1616 = vmatpush2.msra.mxu0 0.0
    %1617 = vmatprep.subr.mxu0 0.0
    %1618 = vmatpush2.msra.mxu0 0.0
    %1619 = vmatprep.subr.mxu0 0.0
    %1620 = vmatpush2.msra.mxu0 0.0
    %1621 = vmatprep.subr.mxu0 0.0
    %1622 = vmatpush2.msra.mxu0 0.0
    %1623 = vmatprep.subr.mxu0 0.0
    %1624 = vmatpush2.msra.mxu0 0.0
    %1625 = vmatprep.subr.mxu0 0.0
    %1626 = vmatpush2.msra.mxu0 0.0
    %1627 = vmatprep.subr.mxu0 0.0
    %1628 = vmatpush2.msra.mxu0 0.0
    %1629 = vmatprep.subr.mxu0 0.0
    %1630 = vmatpush2.msra.mxu0 0.0
    %1631 = vmatprep.subr.mxu0 0.0
    %1632 = vmatpush2.msra.mxu0 0.0
    %1633 = vmatprep.subr.mxu0 0.0
    %1634 = vmatpush2.msra.mxu0 0.0
    %1635 = vmatprep.subr.mxu0 0.0
    %1636 = vmatpush2.msra.mxu0 0.0
    %1637 = vmatprep.subr.mxu0 0.0
    %1638 = vmatpush2.msra.mxu0 0.0
    %1639 = vmatprep.mubr.f32.mxu0 0.0
    %1640 = vmatmul.mubr.f32.gmra.mxu0 %v1570
    %v1641 = vpop.f32.mrf.mxu0
    %v1642 = vadd.f32 0.0, %v1641
    %v1643 = vpop.f32.mrf.mxu0
    %1644 = vmatprep.mubr.f32.mxu0 0.0
    %1645 = vmatmul.mubr.f32.gmra.mxu0 %v1573
    %v1646 = vpop.f32.mrf.mxu0
    %v1647 = vadd.f32 0.0, %v1646
    %v1648 = vpop.f32.mrf.mxu0
    %1649 = vdwg.mxu0
    %s1650 = scalar_lea.vmem %s4, 64
    %v1651 = vld [vmem:[%s1650] sm:$0xff]
    %v1653 = vsel %vm389, %v1642, 0
    %v1656 = vsel %vm389, %v1647, 0
    %1658 = vmatprep.subr.mxu0 0.0
    %1659 = vmatpush1.msra.mxu0 0.0
    %1660 = vmatprep.subr.mxu0 0.0
    %1661 = vmatpush1.msra.mxu0 0.0
    %1662 = vmatprep.subr.mxu0 0.0
    %1663 = vmatpush1.msra.mxu0 0.0
    %1664 = vmatprep.subr.mxu0 0.0
    %1665 = vmatpush1.msra.mxu0 0.0
    %1666 = vmatprep.subr.mxu0 0.0
    %1667 = vmatpush1.msra.mxu0 0.0
    %1668 = vmatprep.subr.mxu0 0.0
    %1669 = vmatpush1.msra.mxu0 0.0
    %1670 = vmatprep.subr.mxu0 0.0
    %1671 = vmatpush1.msra.mxu0 0.0
    %1672 = vmatprep.subr.mxu0 0.0
    %1673 = vmatpush1.msra.mxu0 0.0
    %1674 = vmatprep.subr.mxu0 0.0
    %1675 = vmatpush1.msra.mxu0 0.0
    %1676 = vmatprep.subr.mxu0 0.0
    %1677 = vmatpush1.msra.mxu0 0.0
    %1678 = vmatprep.subr.mxu0 0.0
    %1679 = vmatpush1.msra.mxu0 0.0
    %1680 = vmatprep.subr.mxu0 0.0
    %1681 = vmatpush1.msra.mxu0 0.0
    %1682 = vmatprep.subr.mxu0 0.0
    %1683 = vmatpush1.msra.mxu0 0.0
    %1684 = vmatprep.subr.mxu0 0.0
    %1685 = vmatpush1.msra.mxu0 0.0
    %1686 = vmatprep.subr.mxu0 0.0
    %1687 = vmatpush1.msra.mxu0 0.0
    %1688 = vmatprep.subr.mxu0 0.0
    %1689 = vmatpush1.msra.mxu0 %v1651
    %1690 = vmatprep.subr.mxu0 0.0
    %1691 = vmatpush2.msra.mxu0 0.0
    %1692 = vmatprep.subr.mxu0 0.0
    %1693 = vmatpush2.msra.mxu0 0.0
    %1694 = vmatprep.subr.mxu0 0.0
    %1695 = vmatpush2.msra.mxu0 0.0
    %1696 = vmatprep.subr.mxu0 0.0
    %1697 = vmatpush2.msra.mxu0 0.0
    %1698 = vmatprep.subr.mxu0 0.0
    %1699 = vmatpush2.msra.mxu0 0.0
    %1700 = vmatprep.subr.mxu0 0.0
    %1701 = vmatpush2.msra.mxu0 0.0
    %1702 = vmatprep.subr.mxu0 0.0
    %1703 = vmatpush2.msra.mxu0 0.0
    %1704 = vmatprep.subr.mxu0 0.0
    %1705 = vmatpush2.msra.mxu0 0.0
    %1706 = vmatprep.subr.mxu0 0.0
    %1707 = vmatpush2.msra.mxu0 0.0
    %1708 = vmatprep.subr.mxu0 0.0
    %1709 = vmatpush2.msra.mxu0 0.0
    %1710 = vmatprep.subr.mxu0 0.0
    %1711 = vmatpush2.msra.mxu0 0.0
    %1712 = vmatprep.subr.mxu0 0.0
    %1713 = vmatpush2.msra.mxu0 0.0
    %1714 = vmatprep.subr.mxu0 0.0
    %1715 = vmatpush2.msra.mxu0 0.0
    %1716 = vmatprep.subr.mxu0 0.0
    %1717 = vmatpush2.msra.mxu0 0.0
    %1718 = vmatprep.subr.mxu0 0.0
    %1719 = vmatpush2.msra.mxu0 0.0
    %1720 = vmatprep.subr.mxu0 0.0
    %1721 = vmatpush2.msra.mxu0 0.0
    %1722 = vmatprep.mubr.f32.mxu0 0.0
    %1723 = vmatmul.mubr.f32.gmra.mxu0 %v1653
    %v1724 = vpop.f32.mrf.mxu0
    %v1725 = vadd.f32 0.0, %v1724
    %v1726 = vpop.f32.mrf.mxu0
    %1727 = vmatprep.mubr.f32.mxu0 0.0
    %1728 = vmatmul.mubr.f32.gmra.mxu0 %v1656
    %v1729 = vpop.f32.mrf.mxu0
    %v1730 = vadd.f32 0.0, %v1729
    %v1731 = vpop.f32.mrf.mxu0
    %1732 = vdwg.mxu0
    %v1733 = vadd.f32 %v1564, %v1725
    %v1734 = vadd.f32 %v1565, %v1730
    %v1735 = vld [vmem:[%s5] sm:$0x1]
    %v1737 = vlaneseq
    %v1738 = vshrl.u32 %v1737, 7
    %v1739 = vsub.s32 0, %v1738
    %v1740 = vrot.slane %v1735, %v1739
    %v1742 = vadd.f32 %v1733, %v1740
    %v1743 = vadd.f32 %v1734, %v1740
    %v1744 = vmax.f32 %v1742, 0.0
    %v1745 = vmax.f32 %v1743, 0.0
    %v1746 = vld [vmem:[%s6] sm:$0xf]
    %vm1747 = vcmask 130048
    %v1749 = vsel %vm1747, %v1746, 0
    %1751 = vmatprep.subr.mxu0 0.0
    %1752 = vmatpush1.msra.mxu0 0.0
    %1753 = vmatprep.subr.mxu0 0.0
    %1754 = vmatpush1.msra.mxu0 0.0
    %1755 = vmatprep.subr.mxu0 0.0
    %1756 = vmatpush1.msra.mxu0 0.0
    %1757 = vmatprep.subr.mxu0 0.0
    %1758 = vmatpush1.msra.mxu0 0.0
    %1759 = vmatprep.subr.mxu0 0.0
    %1760 = vmatpush1.msra.mxu0 0.0
    %1761 = vmatprep.subr.mxu0 0.0
    %1762 = vmatpush1.msra.mxu0 0.0
    %1763 = vmatprep.subr.mxu0 0.0
    %1764 = vmatpush1.msra.mxu0 0.0
    %1765 = vmatprep.subr.mxu0 0.0
    %1766 = vmatpush1.msra.mxu0 0.0
    %1767 = vmatprep.subr.mxu0 0.0
    %1768 = vmatpush1.msra.mxu0 0.0
    %1769 = vmatprep.subr.mxu0 0.0
    %1770 = vmatpush1.msra.mxu0 0.0
    %1771 = vmatprep.subr.mxu0 0.0
    %1772 = vmatpush1.msra.mxu0 0.0
    %1773 = vmatprep.subr.mxu0 0.0
    %1774 = vmatpush1.msra.mxu0 0.0
    %1775 = vmatprep.subr.mxu0 0.0
    %1776 = vmatpush1.msra.mxu0 0.0
    %1777 = vmatprep.subr.mxu0 0.0
    %1778 = vmatpush1.msra.mxu0 0.0
    %1779 = vmatprep.subr.mxu0 0.0
    %1780 = vmatpush1.msra.mxu0 %v1745
    %1781 = vmatprep.subr.mxu0 0.0
    %1782 = vmatpush1.msra.mxu0 %v1744
    %1783 = vmatprep.subr.mxu0 0.0
    %1784 = vmatpush2.msra.mxu0 0.0
    %1785 = vmatprep.subr.mxu0 0.0
    %1786 = vmatpush2.msra.mxu0 0.0
    %1787 = vmatprep.subr.mxu0 0.0
    %1788 = vmatpush2.msra.mxu0 0.0
    %1789 = vmatprep.subr.mxu0 0.0
    %1790 = vmatpush2.msra.mxu0 0.0
    %1791 = vmatprep.subr.mxu0 0.0
    %1792 = vmatpush2.msra.mxu0 0.0
    %1793 = vmatprep.subr.mxu0 0.0
    %1794 = vmatpush2.msra.mxu0 0.0
    %1795 = vmatprep.subr.mxu0 0.0
    %1796 = vmatpush2.msra.mxu0 0.0
    %1797 = vmatprep.subr.mxu0 0.0
    %1798 = vmatpush2.msra.mxu0 0.0
    %1799 = vmatprep.subr.mxu0 0.0
    %1800 = vmatpush2.msra.mxu0 0.0
    %1801 = vmatprep.subr.mxu0 0.0
    %1802 = vmatpush2.msra.mxu0 0.0
    %1803 = vmatprep.subr.mxu0 0.0
    %1804 = vmatpush2.msra.mxu0 0.0
    %1805 = vmatprep.subr.mxu0 0.0
    %1806 = vmatpush2.msra.mxu0 0.0
    %1807 = vmatprep.subr.mxu0 0.0
    %1808 = vmatpush2.msra.mxu0 0.0
    %1809 = vmatprep.subr.mxu0 0.0
    %1810 = vmatpush2.msra.mxu0 0.0
    %1811 = vmatprep.subr.mxu0 0.0
    %1812 = vmatpush2.msra.mxu0 0.0
    %1813 = vmatprep.subr.mxu0 0.0
    %1814 = vmatpush2.msra.mxu0 0.0
    %1815 = vmatprep.mubr.f32.mxu0 0.0
    %1816 = vmatmul.mubr.f32.gmra.mxu0 %v1749
    %v1817 = vpop.f32.mrf.mxu0
    %v1818 = vadd.f32 0.0, %v1817
    %v1819 = vpop.f32.mrf.mxu0
    %1820 = vdwg.mxu0
    %v1821 = vld [vmem:[%s8] sm:$0x1]
    %v1822 = vld [vmem:[%s7] sm:$0xff]
    %v1824 = vsel %vm389, %v1818, 0
    %1826 = vmatprep.subr.mxu0 0.0
    %1827 = vmatpush1.msra.mxu0 0.0
    %1828 = vmatprep.subr.mxu0 0.0
    %1829 = vmatpush1.msra.mxu0 0.0
    %1830 = vmatprep.subr.mxu0 0.0
    %1831 = vmatpush1.msra.mxu0 0.0
    %1832 = vmatprep.subr.mxu0 0.0
    %1833 = vmatpush1.msra.mxu0 0.0
    %1834 = vmatprep.subr.mxu0 0.0
    %1835 = vmatpush1.msra.mxu0 0.0
    %1836 = vmatprep.subr.mxu0 0.0
    %1837 = vmatpush1.msra.mxu0 0.0
    %1838 = vmatprep.subr.mxu0 0.0
    %1839 = vmatpush1.msra.mxu0 0.0
    %1840 = vmatprep.subr.mxu0 0.0
    %1841 = vmatpush1.msra.mxu0 0.0
    %1842 = vmatprep.subr.mxu0 0.0
    %1843 = vmatpush1.msra.mxu0 0.0
    %1844 = vmatprep.subr.mxu0 0.0
    %1845 = vmatpush1.msra.mxu0 0.0
    %1846 = vmatprep.subr.mxu0 0.0
    %1847 = vmatpush1.msra.mxu0 0.0
    %1848 = vmatprep.subr.mxu0 0.0
    %1849 = vmatpush1.msra.mxu0 0.0
    %1850 = vmatprep.subr.mxu0 0.0
    %1851 = vmatpush1.msra.mxu0 0.0
    %1852 = vmatprep.subr.mxu0 0.0
    %1853 = vmatpush1.msra.mxu0 0.0
    %1854 = vmatprep.subr.mxu0 0.0
    %1855 = vmatpush1.msra.mxu0 0.0
    %1856 = vmatprep.subr.mxu0 0.0
    %1857 = vmatpush1.msra.mxu0 %v1822
    %1858 = vmatprep.subr.mxu0 0.0
    %1859 = vmatpush2.msra.mxu0 0.0
    %1860 = vmatprep.subr.mxu0 0.0
    %1861 = vmatpush2.msra.mxu0 0.0
    %1862 = vmatprep.subr.mxu0 0.0
    %1863 = vmatpush2.msra.mxu0 0.0
    %1864 = vmatprep.subr.mxu0 0.0
    %1865 = vmatpush2.msra.mxu0 0.0
    %1866 = vmatprep.subr.mxu0 0.0
    %1867 = vmatpush2.msra.mxu0 0.0
    %1868 = vmatprep.subr.mxu0 0.0
    %1869 = vmatpush2.msra.mxu0 0.0
    %1870 = vmatprep.subr.mxu0 0.0
    %1871 = vmatpush2.msra.mxu0 0.0
    %1872 = vmatprep.subr.mxu0 0.0
    %1873 = vmatpush2.msra.mxu0 0.0
    %1874 = vmatprep.subr.mxu0 0.0
    %1875 = vmatpush2.msra.mxu0 0.0
    %1876 = vmatprep.subr.mxu0 0.0
    %1877 = vmatpush2.msra.mxu0 0.0
    %1878 = vmatprep.subr.mxu0 0.0
    %1879 = vmatpush2.msra.mxu0 0.0
    %1880 = vmatprep.subr.mxu0 0.0
    %1881 = vmatpush2.msra.mxu0 0.0
    %1882 = vmatprep.subr.mxu0 0.0
    %1883 = vmatpush2.msra.mxu0 0.0
    %1884 = vmatprep.subr.mxu0 0.0
    %1885 = vmatpush2.msra.mxu0 0.0
    %1886 = vmatprep.subr.mxu0 0.0
    %1887 = vmatpush2.msra.mxu0 0.0
    %1888 = vmatprep.subr.mxu0 0.0
    %1889 = vmatpush2.msra.mxu0 0.0
    %1890 = vmatprep.mubr.f32.mxu0 0.0
    %1891 = vmatmul.mubr.f32.gmra.mxu0 %v1824
    %v1892 = vpop.f32.mrf.mxu0
    %v1893 = vadd.f32 0.0, %v1892
    %v1894 = vpop.f32.mrf.mxu0
    %1895 = vdwg.mxu0
    %v1896 = vadd.f32 %v1821, %v1893
    %s1897 = scalar_lea.vmem %s7, 8
    %v1898 = vld [vmem:[%s1897] sm:$0xff]
    %v1899 = vrot.slane %v1818, 1
    %v1900 = vsel %vm389, %v1899, 0
    %1902 = vmatprep.subr.mxu0 0.0
    %1903 = vmatpush1.msra.mxu0 0.0
    %1904 = vmatprep.subr.mxu0 0.0
    %1905 = vmatpush1.msra.mxu0 0.0
    %1906 = vmatprep.subr.mxu0 0.0
    %1907 = vmatpush1.msra.mxu0 0.0
    %1908 = vmatprep.subr.mxu0 0.0
    %1909 = vmatpush1.msra.mxu0 0.0
    %1910 = vmatprep.subr.mxu0 0.0
    %1911 = vmatpush1.msra.mxu0 0.0
    %1912 = vmatprep.subr.mxu0 0.0
    %1913 = vmatpush1.msra.mxu0 0.0
    %1914 = vmatprep.subr.mxu0 0.0
    %1915 = vmatpush1.msra.mxu0 0.0
    %1916 = vmatprep.subr.mxu0 0.0
    %1917 = vmatpush1.msra.mxu0 0.0
    %1918 = vmatprep.subr.mxu0 0.0
    %1919 = vmatpush1.msra.mxu0 0.0
    %1920 = vmatprep.subr.mxu0 0.0
    %1921 = vmatpush1.msra.mxu0 0.0
    %1922 = vmatprep.subr.mxu0 0.0
    %1923 = vmatpush1.msra.mxu0 0.0
    %1924 = vmatprep.subr.mxu0 0.0
    %1925 = vmatpush1.msra.mxu0 0.0
    %1926 = vmatprep.subr.mxu0 0.0
    %1927 = vmatpush1.msra.mxu0 0.0
    %1928 = vmatprep.subr.mxu0 0.0
    %1929 = vmatpush1.msra.mxu0 0.0
    %1930 = vmatprep.subr.mxu0 0.0
    %1931 = vmatpush1.msra.mxu0 0.0
    %1932 = vmatprep.subr.mxu0 0.0
    %1933 = vmatpush1.msra.mxu0 %v1898
    %1934 = vmatprep.subr.mxu0 0.0
    %1935 = vmatpush2.msra.mxu0 0.0
    %1936 = vmatprep.subr.mxu0 0.0
    %1937 = vmatpush2.msra.mxu0 0.0
    %1938 = vmatprep.subr.mxu0 0.0
    %1939 = vmatpush2.msra.mxu0 0.0
    %1940 = vmatprep.subr.mxu0 0.0
    %1941 = vmatpush2.msra.mxu0 0.0
    %1942 = vmatprep.subr.mxu0 0.0
    %1943 = vmatpush2.msra.mxu0 0.0
    %1944 = vmatprep.subr.mxu0 0.0
    %1945 = vmatpush2.msra.mxu0 0.0
    %1946 = vmatprep.subr.mxu0 0.0
    %1947 = vmatpush2.msra.mxu0 0.0
    %1948 = vmatprep.subr.mxu0 0.0
    %1949 = vmatpush2.msra.mxu0 0.0
    %1950 = vmatprep.subr.mxu0 0.0
    %1951 = vmatpush2.msra.mxu0 0.0
    %1952 = vmatprep.subr.mxu0 0.0
    %1953 = vmatpush2.msra.mxu0 0.0
    %1954 = vmatprep.subr.mxu0 0.0
    %1955 = vmatpush2.msra.mxu0 0.0
    %1956 = vmatprep.subr.mxu0 0.0
    %1957 = vmatpush2.msra.mxu0 0.0
    %1958 = vmatprep.subr.mxu0 0.0
    %1959 = vmatpush2.msra.mxu0 0.0
    %1960 = vmatprep.subr.mxu0 0.0
    %1961 = vmatpush2.msra.mxu0 0.0
    %1962 = vmatprep.subr.mxu0 0.0
    %1963 = vmatpush2.msra.mxu0 0.0
    %1964 = vmatprep.subr.mxu0 0.0
    %1965 = vmatpush2.msra.mxu0 0.0
    %1966 = vmatprep.mubr.f32.mxu0 0.0
    %1967 = vmatmul.mubr.f32.gmra.mxu0 %v1900
    %v1968 = vpop.f32.mrf.mxu0
    %v1969 = vadd.f32 0.0, %v1968
    %v1970 = vpop.f32.mrf.mxu0
    %1971 = vdwg.mxu0
    %v1972 = vadd.f32 %v1896, %v1969
    %s1973 = scalar_lea.vmem %s7, 16
    %v1974 = vld [vmem:[%s1973] sm:$0xff]
    %v1975 = vrot.slane %v1818, 2
    %v1976 = vsel %vm389, %v1975, 0
    %1978 = vmatprep.subr.mxu0 0.0
    %1979 = vmatpush1.msra.mxu0 0.0
    %1980 = vmatprep.subr.mxu0 0.0
    %1981 = vmatpush1.msra.mxu0 0.0
    %1982 = vmatprep.subr.mxu0 0.0
    %1983 = vmatpush1.msra.mxu0 0.0
    %1984 = vmatprep.subr.mxu0 0.0
    %1985 = vmatpush1.msra.mxu0 0.0
    %1986 = vmatprep.subr.mxu0 0.0
    %1987 = vmatpush1.msra.mxu0 0.0
    %1988 = vmatprep.subr.mxu0 0.0
    %1989 = vmatpush1.msra.mxu0 0.0
    %1990 = vmatprep.subr.mxu0 0.0
    %1991 = vmatpush1.msra.mxu0 0.0
    %1992 = vmatprep.subr.mxu0 0.0
    %1993 = vmatpush1.msra.mxu0 0.0
    %1994 = vmatprep.subr.mxu0 0.0
    %1995 = vmatpush1.msra.mxu0 0.0
    %1996 = vmatprep.subr.mxu0 0.0
    %1997 = vmatpush1.msra.mxu0 0.0
    %1998 = vmatprep.subr.mxu0 0.0
    %1999 = vmatpush1.msra.mxu0 0.0
    %2000 = vmatprep.subr.mxu0 0.0
    %2001 = vmatpush1.msra.mxu0 0.0
    %2002 = vmatprep.subr.mxu0 0.0
    %2003 = vmatpush1.msra.mxu0 0.0
    %2004 = vmatprep.subr.mxu0 0.0
    %2005 = vmatpush1.msra.mxu0 0.0
    %2006 = vmatprep.subr.mxu0 0.0
    %2007 = vmatpush1.msra.mxu0 0.0
    %2008 = vmatprep.subr.mxu0 0.0
    %2009 = vmatpush1.msra.mxu0 %v1974
    %2010 = vmatprep.subr.mxu0 0.0
    %2011 = vmatpush2.msra.mxu0 0.0
    %2012 = vmatprep.subr.mxu0 0.0
    %2013 = vmatpush2.msra.mxu0 0.0
    %2014 = vmatprep.subr.mxu0 0.0
    %2015 = vmatpush2.msra.mxu0 0.0
    %2016 = vmatprep.subr.mxu0 0.0
    %2017 = vmatpush2.msra.mxu0 0.0
    %2018 = vmatprep.subr.mxu0 0.0
    %2019 = vmatpush2.msra.mxu0 0.0
    %2020 = vmatprep.subr.mxu0 0.0
    %2021 = vmatpush2.msra.mxu0 0.0
    %2022 = vmatprep.subr.mxu0 0.0
    %2023 = vmatpush2.msra.mxu0 0.0
    %2024 = vmatprep.subr.mxu0 0.0
    %2025 = vmatpush2.msra.mxu0 0.0
    %2026 = vmatprep.subr.mxu0 0.0
    %2027 = vmatpush2.msra.mxu0 0.0
    %2028 = vmatprep.subr.mxu0 0.0
    %2029 = vmatpush2.msra.mxu0 0.0
    %2030 = vmatprep.subr.mxu0 0.0
    %2031 = vmatpush2.msra.mxu0 0.0
    %2032 = vmatprep.subr.mxu0 0.0
    %2033 = vmatpush2.msra.mxu0 0.0
    %2034 = vmatprep.subr.mxu0 0.0
    %2035 = vmatpush2.msra.mxu0 0.0
    %2036 = vmatprep.subr.mxu0 0.0
    %2037 = vmatpush2.msra.mxu0 0.0
    %2038 = vmatprep.subr.mxu0 0.0
    %2039 = vmatpush2.msra.mxu0 0.0
    %2040 = vmatprep.subr.mxu0 0.0
    %2041 = vmatpush2.msra.mxu0 0.0
    %2042 = vmatprep.mubr.f32.mxu0 0.0
    %2043 = vmatmul.mubr.f32.gmra.mxu0 %v1976
    %v2044 = vpop.f32.mrf.mxu0
    %v2045 = vadd.f32 0.0, %v2044
    %v2046 = vpop.f32.mrf.mxu0
    %2047 = vdwg.mxu0
    %v2048 = vadd.f32 %v1972, %v2045
    %s2049 = scalar_lea.vmem %s7, 24
    %v2050 = vld [vmem:[%s2049] sm:$0xff]
    %v2051 = vrot.slane %v1818, 3
    %v2052 = vsel %vm389, %v2051, 0
    %2054 = vmatprep.subr.mxu0 0.0
    %2055 = vmatpush1.msra.mxu0 0.0
    %2056 = vmatprep.subr.mxu0 0.0
    %2057 = vmatpush1.msra.mxu0 0.0
    %2058 = vmatprep.subr.mxu0 0.0
    %2059 = vmatpush1.msra.mxu0 0.0
    %2060 = vmatprep.subr.mxu0 0.0
    %2061 = vmatpush1.msra.mxu0 0.0
    %2062 = vmatprep.subr.mxu0 0.0
    %2063 = vmatpush1.msra.mxu0 0.0
    %2064 = vmatprep.subr.mxu0 0.0
    %2065 = vmatpush1.msra.mxu0 0.0
    %2066 = vmatprep.subr.mxu0 0.0
    %2067 = vmatpush1.msra.mxu0 0.0
    %2068 = vmatprep.subr.mxu0 0.0
    %2069 = vmatpush1.msra.mxu0 0.0
    %2070 = vmatprep.subr.mxu0 0.0
    %2071 = vmatpush1.msra.mxu0 0.0
    %2072 = vmatprep.subr.mxu0 0.0
    %2073 = vmatpush1.msra.mxu0 0.0
    %2074 = vmatprep.subr.mxu0 0.0
    %2075 = vmatpush1.msra.mxu0 0.0
    %2076 = vmatprep.subr.mxu0 0.0
    %2077 = vmatpush1.msra.mxu0 0.0
    %2078 = vmatprep.subr.mxu0 0.0
    %2079 = vmatpush1.msra.mxu0 0.0
    %2080 = vmatprep.subr.mxu0 0.0
    %2081 = vmatpush1.msra.mxu0 0.0
    %2082 = vmatprep.subr.mxu0 0.0
    %2083 = vmatpush1.msra.mxu0 0.0
    %2084 = vmatprep.subr.mxu0 0.0
    %2085 = vmatpush1.msra.mxu0 %v2050
    %2086 = vmatprep.subr.mxu0 0.0
    %2087 = vmatpush2.msra.mxu0 0.0
    %2088 = vmatprep.subr.mxu0 0.0
    %2089 = vmatpush2.msra.mxu0 0.0
    %2090 = vmatprep.subr.mxu0 0.0
    %2091 = vmatpush2.msra.mxu0 0.0
    %2092 = vmatprep.subr.mxu0 0.0
    %2093 = vmatpush2.msra.mxu0 0.0
    %2094 = vmatprep.subr.mxu0 0.0
    %2095 = vmatpush2.msra.mxu0 0.0
    %2096 = vmatprep.subr.mxu0 0.0
    %2097 = vmatpush2.msra.mxu0 0.0
    %2098 = vmatprep.subr.mxu0 0.0
    %2099 = vmatpush2.msra.mxu0 0.0
    %2100 = vmatprep.subr.mxu0 0.0
    %2101 = vmatpush2.msra.mxu0 0.0
    %2102 = vmatprep.subr.mxu0 0.0
    %2103 = vmatpush2.msra.mxu0 0.0
    %2104 = vmatprep.subr.mxu0 0.0
    %2105 = vmatpush2.msra.mxu0 0.0
    %2106 = vmatprep.subr.mxu0 0.0
    %2107 = vmatpush2.msra.mxu0 0.0
    %2108 = vmatprep.subr.mxu0 0.0
    %2109 = vmatpush2.msra.mxu0 0.0
    %2110 = vmatprep.subr.mxu0 0.0
    %2111 = vmatpush2.msra.mxu0 0.0
    %2112 = vmatprep.subr.mxu0 0.0
    %2113 = vmatpush2.msra.mxu0 0.0
    %2114 = vmatprep.subr.mxu0 0.0
    %2115 = vmatpush2.msra.mxu0 0.0
    %2116 = vmatprep.subr.mxu0 0.0
    %2117 = vmatpush2.msra.mxu0 0.0
    %2118 = vmatprep.mubr.f32.mxu0 0.0
    %2119 = vmatmul.mubr.f32.gmra.mxu0 %v2052
    %v2120 = vpop.f32.mrf.mxu0
    %v2121 = vadd.f32 0.0, %v2120
    %v2122 = vpop.f32.mrf.mxu0
    %2123 = vdwg.mxu0
    %v2124 = vadd.f32 %v2048, %v2121
    %v2125 = vld [vmem:[%s9] sm:$0xff]
    %v2126 = vld [vmem:[%s9 + $0x8] sm:$0xff]
    %v2127 = vld [vmem:[%s9 + $0x10] sm:$0xff]
    %v2128 = vld [vmem:[%s9 + $0x18] sm:$0xff]
    %v2129 = vld [vmem:[%s9 + $0x20] sm:$0xff]
    %v2130 = vld [vmem:[%s9 + $0x28] sm:$0xff]
    %v2131 = vld [vmem:[%s9 + $0x30] sm:$0xff]
    %v2132 = vld [vmem:[%s9 + $0x38] sm:$0xff]
    %v2133 = vld [vmem:[%s10] sm:$0x1]
    %v2135 = vsel %vm220, %v2124, 0
    %2137 = vmatprep.subr.mxu0 0.0
    %2138 = vmatpush1.msra.mxu0 0.0
    %2139 = vmatprep.subr.mxu0 0.0
    %2140 = vmatpush1.msra.mxu0 0.0
    %2141 = vmatprep.subr.mxu0 0.0
    %2142 = vmatpush1.msra.mxu0 0.0
    %2143 = vmatprep.subr.mxu0 0.0
    %2144 = vmatpush1.msra.mxu0 0.0
    %2145 = vmatprep.subr.mxu0 0.0
    %2146 = vmatpush1.msra.mxu0 0.0
    %2147 = vmatprep.subr.mxu0 0.0
    %2148 = vmatpush1.msra.mxu0 0.0
    %2149 = vmatprep.subr.mxu0 0.0
    %2150 = vmatpush1.msra.mxu0 0.0
    %2151 = vmatprep.subr.mxu0 0.0
    %2152 = vmatpush1.msra.mxu0 0.0
    %2153 = vmatprep.subr.mxu0 0.0
    %2154 = vmatpush1.msra.mxu0 %v2132
    %2155 = vmatprep.subr.mxu0 0.0
    %2156 = vmatpush1.msra.mxu0 %v2131
    %2157 = vmatprep.subr.mxu0 0.0
    %2158 = vmatpush1.msra.mxu0 %v2130
    %2159 = vmatprep.subr.mxu0 0.0
    %2160 = vmatpush1.msra.mxu0 %v2129
    %2161 = vmatprep.subr.mxu0 0.0
    %2162 = vmatpush1.msra.mxu0 %v2128
    %2163 = vmatprep.subr.mxu0 0.0
    %2164 = vmatpush1.msra.mxu0 %v2127
    %2165 = vmatprep.subr.mxu0 0.0
    %2166 = vmatpush1.msra.mxu0 %v2126
    %2167 = vmatprep.subr.mxu0 0.0
    %2168 = vmatpush1.msra.mxu0 %v2125
    %2169 = vmatprep.subr.mxu0 0.0
    %2170 = vmatpush2.msra.mxu0 0.0
    %2171 = vmatprep.subr.mxu0 0.0
    %2172 = vmatpush2.msra.mxu0 0.0
    %2173 = vmatprep.subr.mxu0 0.0
    %2174 = vmatpush2.msra.mxu0 0.0
    %2175 = vmatprep.subr.mxu0 0.0
    %2176 = vmatpush2.msra.mxu0 0.0
    %2177 = vmatprep.subr.mxu0 0.0
    %2178 = vmatpush2.msra.mxu0 0.0
    %2179 = vmatprep.subr.mxu0 0.0
    %2180 = vmatpush2.msra.mxu0 0.0
    %2181 = vmatprep.subr.mxu0 0.0
    %2182 = vmatpush2.msra.mxu0 0.0
    %2183 = vmatprep.subr.mxu0 0.0
    %2184 = vmatpush2.msra.mxu0 0.0
    %2185 = vmatprep.subr.mxu0 0.0
    %2186 = vmatpush2.msra.mxu0 0.0
    %2187 = vmatprep.subr.mxu0 0.0
    %2188 = vmatpush2.msra.mxu0 0.0
    %2189 = vmatprep.subr.mxu0 0.0
    %2190 = vmatpush2.msra.mxu0 0.0
    %2191 = vmatprep.subr.mxu0 0.0
    %2192 = vmatpush2.msra.mxu0 0.0
    %2193 = vmatprep.subr.mxu0 0.0
    %2194 = vmatpush2.msra.mxu0 0.0
    %2195 = vmatprep.subr.mxu0 0.0
    %2196 = vmatpush2.msra.mxu0 0.0
    %2197 = vmatprep.subr.mxu0 0.0
    %2198 = vmatpush2.msra.mxu0 0.0
    %2199 = vmatprep.subr.mxu0 0.0
    %2200 = vmatpush2.msra.mxu0 0.0
    %2201 = vmatprep.mubr.f32.mxu0 0.0
    %2202 = vmatmul.mubr.f32.gmra.mxu0 %v2135
    %v2203 = vpop.f32.mrf.mxu0
    %v2204 = vadd.f32 %v2133, %v2203
    %v2205 = vpop.f32.mrf.mxu0
    %2206 = vdwg.mxu0
    %v2207 = vld [vmem:[%s14] sm:$0x1]
    %v2208 = vld [vmem:[%s15] sm:$0x1]
    %v2209 = vld [vmem:[%s11] sm:$0xff]
    %v2210 = vld [vmem:[%s11 + $0x8] sm:$0xff]
    %v2211 = vld [vmem:[%s11 + $0x10] sm:$0xff]
    %v2212 = vld [vmem:[%s11 + $0x18] sm:$0xff]
    %v2213 = vld [vmem:[%s12] sm:$0xff]
    %v2214 = vld [vmem:[%s12 + $0x8] sm:$0xff]
    %v2215 = vld [vmem:[%s12 + $0x10] sm:$0xff]
    %v2216 = vld [vmem:[%s12 + $0x18] sm:$0xff]
    %v2217 = vld [vmem:[%s13] sm:$0x1]
    %vm2218 = vcmask 261120
    %v2220 = vsel %vm2218, %v2207, 0
    %2222 = vmatprep.subr.mxu0 0.0
    %2223 = vmatpush1.msra.mxu0 0.0
    %2224 = vmatprep.subr.mxu0 0.0
    %2225 = vmatpush1.msra.mxu0 0.0
    %2226 = vmatprep.subr.mxu0 0.0
    %2227 = vmatpush1.msra.mxu0 0.0
    %2228 = vmatprep.subr.mxu0 0.0
    %2229 = vmatpush1.msra.mxu0 0.0
    %2230 = vmatprep.subr.mxu0 0.0
    %2231 = vmatpush1.msra.mxu0 0.0
    %2232 = vmatprep.subr.mxu0 0.0
    %2233 = vmatpush1.msra.mxu0 0.0
    %2234 = vmatprep.subr.mxu0 0.0
    %2235 = vmatpush1.msra.mxu0 0.0
    %2236 = vmatprep.subr.mxu0 0.0
    %2237 = vmatpush1.msra.mxu0 0.0
    %2238 = vmatprep.subr.mxu0 0.0
    %2239 = vmatpush1.msra.mxu0 0.0
    %2240 = vmatprep.subr.mxu0 0.0
    %2241 = vmatpush1.msra.mxu0 0.0
    %2242 = vmatprep.subr.mxu0 0.0
    %2243 = vmatpush1.msra.mxu0 0.0
    %2244 = vmatprep.subr.mxu0 0.0
    %2245 = vmatpush1.msra.mxu0 0.0
    %2246 = vmatprep.subr.mxu0 0.0
    %2247 = vmatpush1.msra.mxu0 %v2216
    %2248 = vmatprep.subr.mxu0 0.0
    %2249 = vmatpush1.msra.mxu0 %v2215
    %2250 = vmatprep.subr.mxu0 0.0
    %2251 = vmatpush1.msra.mxu0 %v2214
    %2252 = vmatprep.subr.mxu0 0.0
    %2253 = vmatpush1.msra.mxu0 %v2213
    %2254 = vmatprep.subr.mxu0 0.0
    %2255 = vmatpush2.msra.mxu0 0.0
    %2256 = vmatprep.subr.mxu0 0.0
    %2257 = vmatpush2.msra.mxu0 0.0
    %2258 = vmatprep.subr.mxu0 0.0
    %2259 = vmatpush2.msra.mxu0 0.0
    %2260 = vmatprep.subr.mxu0 0.0
    %2261 = vmatpush2.msra.mxu0 0.0
    %2262 = vmatprep.subr.mxu0 0.0
    %2263 = vmatpush2.msra.mxu0 0.0
    %2264 = vmatprep.subr.mxu0 0.0
    %2265 = vmatpush2.msra.mxu0 0.0
    %2266 = vmatprep.subr.mxu0 0.0
    %2267 = vmatpush2.msra.mxu0 0.0
    %2268 = vmatprep.subr.mxu0 0.0
    %2269 = vmatpush2.msra.mxu0 0.0
    %2270 = vmatprep.subr.mxu0 0.0
    %2271 = vmatpush2.msra.mxu0 0.0
    %2272 = vmatprep.subr.mxu0 0.0
    %2273 = vmatpush2.msra.mxu0 0.0
    %2274 = vmatprep.subr.mxu0 0.0
    %2275 = vmatpush2.msra.mxu0 0.0
    %2276 = vmatprep.subr.mxu0 0.0
    %2277 = vmatpush2.msra.mxu0 0.0
    %2278 = vmatprep.subr.mxu0 0.0
    %2279 = vmatpush2.msra.mxu0 0.0
    %2280 = vmatprep.subr.mxu0 0.0
    %2281 = vmatpush2.msra.mxu0 0.0
    %2282 = vmatprep.subr.mxu0 0.0
    %2283 = vmatpush2.msra.mxu0 0.0
    %2284 = vmatprep.subr.mxu0 0.0
    %2285 = vmatpush2.msra.mxu0 0.0
    %2286 = vmatprep.mubr.f32.mxu0 0.0
    %2287 = vmatmul.mubr.f32.gmra.mxu0 %v2220
    %v2288 = vpop.f32.mrf.mxu0
    %v2289 = vadd.f32 0.0, %v2288
    %v2290 = vpop.f32.mrf.mxu0
    %2291 = vdwg.mxu0
    %v2293 = vsel %vm2218, %v2204, 0
    %2295 = vmatprep.subr.mxu0 0.0
    %2296 = vmatpush1.msra.mxu0 0.0
    %2297 = vmatprep.subr.mxu0 0.0
    %2298 = vmatpush1.msra.mxu0 0.0
    %2299 = vmatprep.subr.mxu0 0.0
    %2300 = vmatpush1.msra.mxu0 0.0
    %2301 = vmatprep.subr.mxu0 0.0
    %2302 = vmatpush1.msra.mxu0 0.0
    %2303 = vmatprep.subr.mxu0 0.0
    %2304 = vmatpush1.msra.mxu0 0.0
    %2305 = vmatprep.subr.mxu0 0.0
    %2306 = vmatpush1.msra.mxu0 0.0
    %2307 = vmatprep.subr.mxu0 0.0
    %2308 = vmatpush1.msra.mxu0 0.0
    %2309 = vmatprep.subr.mxu0 0.0
    %2310 = vmatpush1.msra.mxu0 0.0
    %2311 = vmatprep.subr.mxu0 0.0
    %2312 = vmatpush1.msra.mxu0 0.0
    %2313 = vmatprep.subr.mxu0 0.0
    %2314 = vmatpush1.msra.mxu0 0.0
    %2315 = vmatprep.subr.mxu0 0.0
    %2316 = vmatpush1.msra.mxu0 0.0
    %2317 = vmatprep.subr.mxu0 0.0
    %2318 = vmatpush1.msra.mxu0 0.0
    %2319 = vmatprep.subr.mxu0 0.0
    %2320 = vmatpush1.msra.mxu0 %v2212
    %2321 = vmatprep.subr.mxu0 0.0
    %2322 = vmatpush1.msra.mxu0 %v2211
    %2323 = vmatprep.subr.mxu0 0.0
    %2324 = vmatpush1.msra.mxu0 %v2210
    %2325 = vmatprep.subr.mxu0 0.0
    %2326 = vmatpush1.msra.mxu0 %v2209
    %2327 = vmatprep.subr.mxu0 0.0
    %2328 = vmatpush2.msra.mxu0 0.0
    %2329 = vmatprep.subr.mxu0 0.0
    %2330 = vmatpush2.msra.mxu0 0.0
    %2331 = vmatprep.subr.mxu0 0.0
    %2332 = vmatpush2.msra.mxu0 0.0
    %2333 = vmatprep.subr.mxu0 0.0
    %2334 = vmatpush2.msra.mxu0 0.0
    %2335 = vmatprep.subr.mxu0 0.0
    %2336 = vmatpush2.msra.mxu0 0.0
    %2337 = vmatprep.subr.mxu0 0.0
    %2338 = vmatpush2.msra.mxu0 0.0
    %2339 = vmatprep.subr.mxu0 0.0
    %2340 = vmatpush2.msra.mxu0 0.0
    %2341 = vmatprep.subr.mxu0 0.0
    %2342 = vmatpush2.msra.mxu0 0.0
    %2343 = vmatprep.subr.mxu0 0.0
    %2344 = vmatpush2.msra.mxu0 0.0
    %2345 = vmatprep.subr.mxu0 0.0
    %2346 = vmatpush2.msra.mxu0 0.0
    %2347 = vmatprep.subr.mxu0 0.0
    %2348 = vmatpush2.msra.mxu0 0.0
    %2349 = vmatprep.subr.mxu0 0.0
    %2350 = vmatpush2.msra.mxu0 0.0
    %2351 = vmatprep.subr.mxu0 0.0
    %2352 = vmatpush2.msra.mxu0 0.0
    %2353 = vmatprep.subr.mxu0 0.0
    %2354 = vmatpush2.msra.mxu0 0.0
    %2355 = vmatprep.subr.mxu0 0.0
    %2356 = vmatpush2.msra.mxu0 0.0
    %2357 = vmatprep.subr.mxu0 0.0
    %2358 = vmatpush2.msra.mxu0 0.0
    %2359 = vmatprep.mubr.f32.mxu0 0.0
    %2360 = vmatmul.mubr.f32.gmra.mxu0 %v2293
    %v2361 = vpop.f32.mrf.mxu0
    %v2362 = vadd.f32 %v2289, %v2361
    %v2363 = vpop.f32.mrf.mxu0
    %2364 = vdwg.mxu0
    %v2365 = vadd.f32 %v2362, %v2217
    %v2366 = vxor.u32 %v2365, 2147483648
    %v2367 = vmul.f32 %v2366, 1.442695
    %v2368 = vpow.pop %v2367
    %v2369 = vadd.f32 %v2368, 1.0
    %v2370 = vrcp.pop %v2369
    %v2371 = vmul.f32 1.0, %v2370
    %v2372 = vtanh.pop %v2365
    %v2374 = vlaneseq
    %v2375 = vshrl.u32 %v2374, 7
    %v2376 = vsub.s32 0, %v2375
    %v2377 = vrot.slane %v2208, %v2376
    %2378 = vrot.lane.b32.xlu0 %v2377, 32
    %v2379 = vpop.permute.xlu0 %2378
    %v2381 = vmul.f32 %v2371, %v2379
    %2383 = vrot.lane.b32.xlu0 %v2372, 64
    %v2384 = vpop.permute.xlu0 %2383
    %v2386 = vmul.f32 %v2371, %v2384
    %2388 = vrot.lane.b32.xlu0 %v2386, 32
    %v2389 = vpop.permute.xlu0 %2388
    %v2391 = vadd.f32 %v2381, %v2389
    %v2392 = vtanh.pop %v2391
    %2394 = vrot.lane.b32.xlu0 %v2392, 64
    %v2395 = vpop.permute.xlu0 %2394
    %v2397 = vmul.f32 %v2371, %v2395
    %2399 = vrot.lane.b32.xlu0 %v2397, 32
    %v2400 = vpop.permute.xlu0 %2399
    %vm2402 = vcmask 253952
    %2403 = vst.msk [vmem:[#allocation2] sm:$0x1] %vm2402, %v2400
    %2405 = vrot.lane.b32.xlu0 %v2391, 96
    %v2406 = vpop.permute.xlu0 %2405
    %2408 = vst.msk [vmem:[#allocation4] sm:$0x1] %vm2402, %v2406
    // Predicated region
    $region66: #{tpu_custom_call.1} parent=1 // pred_check
      _
    $region67: #{tpu_custom_call.1} parent=1 // pred_check_branch
      %2410 = sbr.rel (0) target = $region69
    $region68: #{tpu_custom_call.1} parent=1 // pred_region
      %s2412 = ssub.s32 16, 16
      %2413 = vsyncadd [#allocation3], %s2412
      %s2415 = sshll.u32 [#allocation2], 4
      %s2416 = int_to_ptr.vmem [resolvable:$true] %s2415
      %2418 = dma.vmem_to_hbm [thread:$0]  %s2416, 16, %s16, [#allocation3]
    $region69: #{tpu_custom_call.1} parent=1 // pred_fallthru
      _
    // Predicated region
    $region70: #{tpu_custom_call.1} parent=1 // pred_check
      _
    $region71: #{tpu_custom_call.1} parent=1 // pred_check_branch
      %2420 = sbr.rel (0) target = $region73
    $region72: #{tpu_custom_call.1} parent=1 // pred_region
      %s2422 = ssub.s32 16, 16
      %2423 = vsyncadd [#allocation5], %s2422
      %s2425 = sshll.u32 [#allocation4], 4
      %s2426 = int_to_ptr.vmem [resolvable:$true] %s2425
      %2428 = dma.vmem_to_hbm [thread:$0]  %s2426, 16, %s17, [#allocation5]
    $region73: #{tpu_custom_call.1} parent=1 // pred_fallthru
      _
    // Predicated region
    $region74: #{tpu_custom_call.1} parent=1 // pred_check
      _
    $region75: #{tpu_custom_call.1} parent=1 // pred_check_branch
      %2430 = sbr.rel (0) target = $region77
    $region76: #{tpu_custom_call.1} parent=1 // pred_region
      %2431 = dma.done [#allocation3], 16
    $region77: #{tpu_custom_call.1} parent=1 // pred_fallthru
      _
    // Predicated region
    $region78: #{tpu_custom_call.1} parent=1 // pred_check
      _
    $region79: #{tpu_custom_call.1} parent=1 // pred_check_branch
      %2433 = sbr.rel (0) target = $region81
    $region80: #{tpu_custom_call.1} parent=1 // pred_region
      %2434 = dma.done [#allocation5], 16
    $region81: #{tpu_custom_call.1} parent=1 // pred_fallthru
      _
    %2435 = vsyncpa [#allocation3], 1
    %2436 = vsyncpa [#allocation5], 1

</llo_original>
